<compile_context>
chip_gen: v7x
topology: tpu7x:2x2x1
jax: 0.10.0
libtpu: 0.0.40
codegen_flags: <defaults>
</compile_context>

<pallas_src>
import functools

import jax
import jax.numpy as jnp
from jax.experimental import pallas as pl
from jax.experimental.pallas import tpu as pltpu


# ----------------------------------------------------------------------------
# Small helpers
# ----------------------------------------------------------------------------
def _round_up(x, m):
    return (x + m - 1) // m * m


def _pad2(a, shape):
    return jnp.pad(a, [(0, s - d) for d, s in zip(a.shape, shape)])


def _tpu_vmem_capacity_bytes():
    try:
        return int(pltpu.get_tpu_info().vmem_capacity_bytes)
    except Exception:
        return 64 << 20  # conservative (v7x per-TensorCore VMEM)


def _slab_budget_bytes(vmem_cap):
    """Double-buffered A_hat row-slab budget, generation-aware."""
    return (24 << 20) if vmem_cap >= (100 << 20) else (8 << 20)


def _choose_row_tile(n_pad, slab_budget_bytes):
    """Largest tm (multiple of 128 dividing n_pad) whose double-buffered bf16
    A_hat slab fits the budget.  Falls back to 128."""
    best = 128
    tm = 128
    while tm <= n_pad:
        if n_pad % tm == 0 and 2 * tm * n_pad * 2 <= slab_budget_bytes:
            best = tm
        tm += 128
    return best


def _vmem_limit_bytes(n_pad, c_pad, tm, vmem_cap):
    """Explicit scoped-VMEM limit from the actual resident set (+ headroom)."""
    a_slab = 2 * tm * n_pad * 2        # double-buffered bf16 A row slab
    xw0_in = 2 * n_pad * c_pad * 2     # resident bf16 XW0 input (count 2 bufs)
    w_in = 2 * c_pad * c_pad * 2       # per-layer next-W (bf16)
    b_in = 2 * c_pad * 4               # per-layer bias
    out_buf = 2 * tm * c_pad * 4       # double-buffered f32 output tile
    scratch = 2 * n_pad * c_pad * 2    # two bf16 XW ping-pong buffers
    need = a_slab + xw0_in + w_in + b_in + out_buf + scratch
    limit = need + need // 4 + (4 << 20)            # 25% + 4 MiB headroom
    return int(min(max(limit, 32 << 20), vmem_cap - (vmem_cap >> 3)))


# ----------------------------------------------------------------------------
# Fused Pallas kernel: 3 x (A_hat @ XW_l + b_l), XW ping-pong kept in VMEM
# ----------------------------------------------------------------------------
def _fused_gcn_kernel(a_ref, xw0_ref, w_nxt_ref, b_ref, o_ref, xw_a, xw_b, *, tm):
    """Grid = (3 layers, N_pad // tm row tiles); layer is the slow axis.

    a_ref    : (tm, N_pad)    bf16  streamed row slab of A_hat
    xw0_ref  : (N_pad, C_pad) bf16  hoisted x @ W1 (resident, one DMA)
    w_nxt_ref: (C_pad, C_pad) bf16  W_{l+1} (layer dim squeezed; dummy at l==2)
    b_ref    : (1, C_pad)     f32   b_l (layer dim squeezed)
    o_ref    : (tm, C_pad)    f32   output row tile (layer 2's write survives)
    xw_a/xw_b: (N_pad, C_pad) bf16  ping-pong XW scratch for layers 1 / 2
    """
    layer = pl.program_id(0)
    tile = pl.program_id(1)
    row0 = pl.multiple_of(tile * tm, tm)

    def layer_body(src_ref, dst_ref):
        # Dominant, HBM-bound aggregation matmul for this row slab.
        agg = jnp.dot(a_ref[...], src_ref[...], preferred_element_type=jnp.float32)
        out_tile = agg + b_ref[...]
        if dst_ref is not None:
            # Fold the NEXT layer's feature transform into the epilogue; the
            # MXU has slack under the A-slab DMA stream, so this is ~free.
            nxt = jnp.dot(out_tile.astype(jnp.bfloat16), w_nxt_ref[...],
                          preferred_element_type=jnp.float32)
            dst_ref[pl.ds(row0, tm), :] = nxt.astype(jnp.bfloat16)
        # Writing the output every layer is cheap VMEM traffic; the final
        # (layer 2) HBM writeback wins because layer is the slow grid axis.
        o_ref[...] = out_tile.astype(o_ref.dtype)

    @pl.when(layer == 0)
    def _():
        layer_body(xw0_ref, xw_a)     # read hoisted x@W1, produce XW for layer 1

    @pl.when(layer == 1)
    def _():
        layer_body(xw_a, xw_b)        # read XW_1, produce XW for layer 2

    @pl.when(layer == 2)
    def _():
        layer_body(xw_b, None)        # read XW_2, final layer


def _gcn1_fused(a_pad_bf16, xw0_pad_bf16, w_next_stack, b_stack, *, tm, vmem_cap):
    n_pad = a_pad_bf16.shape[0]
    c_pad = xw0_pad_bf16.shape[1]
    n_tiles = n_pad // tm
    kernel = functools.partial(_fused_gcn_kernel, tm=tm)
    return pl.pallas_call(
        kernel,
        out_shape=jax.ShapeDtypeStruct((n_pad, c_pad), jnp.float32),
        grid_spec=pltpu.PrefetchScalarGridSpec(
            num_scalar_prefetch=0,
            grid=(3, n_tiles),
            in_specs=[
                # Streamed, double-buffered bf16 row slab of A_hat (the roofline).
                pl.BlockSpec((tm, n_pad), lambda l, i: (i, 0)),
                # Hoisted bf16 x@W1: constant block index -> DMA'd once, resident.
                pl.BlockSpec((n_pad, c_pad), lambda l, i: (0, 0)),
                # Per-layer NEXT weight / current bias; layer dim squeezed.
                pl.BlockSpec((None, c_pad, c_pad), lambda l, i: (l, 0, 0)),
                pl.BlockSpec((None, 1, c_pad), lambda l, i: (l, 0, 0)),
            ],
            out_specs=pl.BlockSpec((tm, c_pad), lambda l, i: (i, 0)),
            scratch_shapes=[
                pltpu.VMEM((n_pad, c_pad), jnp.bfloat16),   # XW ping
                pltpu.VMEM((n_pad, c_pad), jnp.bfloat16),   # XW pong
            ],
        ),
        compiler_params=pltpu.CompilerParams(
            # Layer axis is sequential; row axis carries the XW scratch that the
            # next layer reads in full -> both "arbitrary".
            dimension_semantics=("arbitrary", "arbitrary"),
            vmem_limit_bytes=_vmem_limit_bytes(n_pad, c_pad, tm, vmem_cap),
        ),
    )(a_pad_bf16, xw0_pad_bf16, w_next_stack, b_stack)


# ----------------------------------------------------------------------------
# Glue (plain JAX): PyG gcn_norm semantics, built once per graph.
# ----------------------------------------------------------------------------
def normalized_dense_adjacency(edge_index, num_nodes):
    """Dense A_hat = D^{-1/2} (A + I) D^{-1/2}, indexed A_hat[dst, src]."""
    src = edge_index[0]
    dst = edge_index[1]
    loop = jnp.arange(num_nodes, dtype=edge_index.dtype)
    src = jnp.concatenate([src, loop])
    dst = jnp.concatenate([dst, loop])
    a = jnp.zeros((num_nodes, num_nodes), jnp.float32).at[dst, src].add(1.0)
    deg = a.sum(axis=1)
    deg_inv_sqrt = jnp.where(deg > 0, 1.0 / jnp.sqrt(deg), 0.0)
    return deg_inv_sqrt[:, None] * a * deg_inv_sqrt[None, :]


# ----------------------------------------------------------------------------
# Model: GCN1.forward == conv1 -> conv2 -> conv3 (no nonlinearities)
# ----------------------------------------------------------------------------
def make_params(key, in_channels, hidden_channels, out_channels):
    """Glorot-style weights; small nonzero biases to exercise the bias path
    (PyG default init is zero bias — forward semantics are identical)."""
    def glorot(k, fan_in, fan_out):
        limit = jnp.sqrt(6.0 / (fan_in + fan_out))
        return jax.random.uniform(k, (fan_in, fan_out), jnp.float32,
                                  minval=-limit, maxval=limit)

    k1, k2, k3, kb1, kb2, kb3 = jax.random.split(key, 6)
    return {
        "w1": glorot(k1, in_channels, hidden_channels),
        "b1": 0.1 * jax.random.normal(kb1, (1, hidden_channels), jnp.float32),
        "w2": glorot(k2, hidden_channels, out_channels),
        "b2": 0.1 * jax.random.normal(kb2, (1, out_channels), jnp.float32),
        "w3": glorot(k3, hidden_channels, out_channels),
        "b3": 0.1 * jax.random.normal(kb3, (1, out_channels), jnp.float32),
    }


def gcn1_prepare(params, edge_index, num_nodes):
    """One-time preparation of graph/weight constants (reusable across calls)."""
    in_ch, hidden = params["w1"].shape
    out_ch = params["w3"].shape[1]
    # The reference module applies conv3 (declared in_dim = hidden) to conv2's
    # out-channel output, so it only runs when hidden == out.
    assert hidden == out_ch and params["w2"].shape == (hidden, out_ch), (
        "GCN1 requires hidden_channels == out_channels")

    c_pad = _round_up(max(in_ch, hidden, out_ch), 128)
    n_pad = _round_up(max(num_nodes, 8), 128)
    vmem_cap = _tpu_vmem_capacity_bytes()
    tm = _choose_row_tile(n_pad, _slab_budget_bytes(vmem_cap))

    a_hat = normalized_dense_adjacency(edge_index, num_nodes)
    a_pad = _pad2(a_hat, (n_pad, n_pad)).astype(jnp.bfloat16)

    w_next = jnp.stack([
        _pad2(params["w2"], (c_pad, c_pad)),
        _pad2(params["w3"], (c_pad, c_pad)),
        jnp.zeros((c_pad, c_pad), jnp.float32),     # unused at layer 2
    ]).astype(jnp.bfloat16)
    b_stack = jnp.stack([
        _pad2(params["b1"], (1, c_pad)),
        _pad2(params["b2"], (1, c_pad)),
        _pad2(params["b3"], (1, c_pad)),
    ]).astype(jnp.float32)

    return dict(a_pad=a_pad, w1=params["w1"].astype(jnp.float32),
                w_next=w_next, b_stack=b_stack,
                n=num_nodes, out_ch=out_ch, n_pad=n_pad, c_pad=c_pad,
                tm=tm, vmem_cap=vmem_cap)


def gcn1_apply(prep, x):
    """Forward pass using prepared constants; only x-dependent work per call."""
    n_pad, c_pad = prep["n_pad"], prep["c_pad"]
    # Hoisted layer-0 feature transform (f32 accumulate in XLA, bf16 for MXU).
    xw0 = jnp.dot(x.astype(jnp.float32), prep["w1"],
                  preferred_element_type=jnp.float32)
    xw0_pad = _pad2(xw0, (n_pad, c_pad)).astype(jnp.bfloat16)
    out_pad = _gcn1_fused(prep["a_pad"], xw0_pad, prep["w_next"], prep["b_stack"],
                          tm=prep["tm"], vmem_cap=prep["vmem_cap"])
    return out_pad[:prep["n"], :prep["out_ch"]]


def gcn1_forward(params, x, edge_index, *, prep=None):
    if prep is None:
        prep = gcn1_prepare(params, edge_index, x.shape[0])
    return gcn1_apply(prep, x)


# ----------------------------------------------------------------------------
# Pure-JAX reference mirroring the kernel's precision (bf16 MXU operands,
# f32 accumulation) for the self-check.
# ----------------------------------------------------------------------------
def gcn1_reference(params, x, a_hat):
    a_bf = a_hat.astype(jnp.bfloat16)
    xw = jnp.dot(x, params["w1"], preferred_element_type=jnp.float32)
    h = jnp.dot(a_bf, xw.astype(jnp.bfloat16),
                preferred_element_type=jnp.float32) + params["b1"]
    for wk, bk in (("w2", "b2"), ("w3", "b3")):
        xw = jnp.dot(h.astype(jnp.bfloat16), params[wk].astype(jnp.bfloat16),
                     preferred_element_type=jnp.float32)
        h = jnp.dot(a_bf, xw.astype(jnp.bfloat16),
                    preferred_element_type=jnp.float32) + params[bk]
    return h


if __name__ == "__main__":
    key = jax.random.PRNGKey(0)
    k_x, k_e, k_p = jax.random.split(key, 3)

    num_nodes = 32
    in_channels = 16
    hidden_channels = 32
    out_channels = 32   # == hidden so conv3's declared in-dim matches its input
    num_edges = 64

    x = jax.random.normal(k_x, (num_nodes, in_channels), jnp.float32)
    edge_index = jax.random.randint(
        k_e, (2, num_edges), minval=0, maxval=num_nodes, dtype=jnp.int32)
    params = make_params(k_p, in_channels, hidden_channels, out_channels)

    # Prepare graph / weight constants ONCE; reusable across many forward calls.
    prep = gcn1_prepare(params, edge_index, num_nodes)

    out = gcn1_apply(prep, x)
    jax.block_until_ready(out)

    a_hat = normalized_dense_adjacency(edge_index, num_nodes)
    ref = gcn1_reference(params, x, a_hat)

    assert out.shape == (num_nodes, out_channels)
    assert bool(jnp.all(jnp.isfinite(out)))
    assert jnp.allclose(out, ref, atol=1e-2, rtol=1e-2), (
        float(jnp.max(jnp.abs(out - ref))))

    print("KERNEL_OK")
</pallas_src>

<mosaic_0001>
module attributes {stable_mosaic.version = 11 : i64} {
  func.func @_fused_gcn_kernel(%arg0: i32, %arg1: i32, %arg2: memref<128x128xbf16, #tpu.memory_space<vmem>>, %arg3: memref<128x128xbf16, #tpu.memory_space<vmem>>, %arg4: memref<1x128x128xbf16, #tpu.memory_space<vmem>>, %arg5: memref<1x1x128xf32, #tpu.memory_space<vmem>>, %arg6: memref<128x128xf32, #tpu.memory_space<vmem>>, %arg7: memref<128x128xbf16, #tpu.memory_space<vmem>>, %arg8: memref<128x128xbf16, #tpu.memory_space<vmem>>) attributes {dimension_semantics = [#tpu.dimension_semantics<arbitrary>, #tpu.dimension_semantics<arbitrary>], iteration_bounds = array<i64: 3, 1>, scalar_prefetch = 0 : i64, scratch_operands = 2 : i64, tpu.core_type = #tpu.core_type<tc>, window_params = [{transform_indices = @transform_0, window_bounds = array<i64: 128, 128>}, {pipeline_mode = #tpu.pipeline_mode<synchronous>, transform_indices = @transform_1, window_bounds = array<i64: 128, 128>}, {transform_indices = @transform_2, window_bounds = array<i64: 1, 128, 128>}, {transform_indices = @transform_3, window_bounds = array<i64: 1, 1, 128>}, {transform_indices = @transform_4, window_bounds = array<i64: 128, 128>}]} {
    %c128_i32 = arith.constant 128 : i32
    %0 = arith.muli %arg1, %c128_i32 : i32
    %1 = tpu.assume_multiple %0, 128 : i32
    %c0_i32 = arith.constant 0 : i32
    %2 = arith.cmpi eq, %arg0, %c0_i32 : i32
    %3 = arith.extui %2 : i1 to i32
    %c0_i32_0 = arith.constant 0 : i32
    %4 = arith.cmpi ne, %3, %c0_i32_0 : i32
    scf.if %4 {
      %c0 = arith.constant 0 : index
      %c0_3 = arith.constant 0 : index
      %11 = vector.load %arg2[%c0, %c0_3] : memref<128x128xbf16, #tpu.memory_space<vmem>>, vector<128x128xbf16>
      %c0_4 = arith.constant 0 : index
      %c0_5 = arith.constant 0 : index
      %12 = vector.load %arg3[%c0_4, %c0_5] : memref<128x128xbf16, #tpu.memory_space<vmem>>, vector<128x128xbf16>
      %cst = arith.constant dense<0.000000e+00> : vector<128x128xf32>
      %13 = tpu.matmul %11, %12, %cst {dimension_numbers = #tpu.dot_dimension_numbers<[1], [0], [0], [1], [0, 0, 1, 1], [], []>} : vector<128x128xbf16>, vector<128x128xbf16>, vector<128x128xf32> -> vector<128x128xf32>
      %c0_6 = arith.constant 0 : index
      %c0_7 = arith.constant 0 : index
      %c0_8 = arith.constant 0 : index
      %14 = vector.load %arg5[%c0_6, %c0_7, %c0_8] : memref<1x1x128xf32, #tpu.memory_space<vmem>>, vector<1x1x128xf32>
      %15 = vector.shape_cast %14 : vector<1x1x128xf32> to vector<1x128xf32>
      %16 = vector.broadcast %15 : vector<1x128xf32> to vector<128x128xf32>
      %17 = arith.addf %13, %16 : vector<128x128xf32>
      %18 = arith.truncf %17 : vector<128x128xf32> to vector<128x128xbf16>
      %c0_9 = arith.constant 0 : index
      %c0_10 = arith.constant 0 : index
      %c0_11 = arith.constant 0 : index
      %19 = vector.load %arg4[%c0_9, %c0_10, %c0_11] : memref<1x128x128xbf16, #tpu.memory_space<vmem>>, vector<1x128x128xbf16>
      %20 = vector.shape_cast %19 : vector<1x128x128xbf16> to vector<128x128xbf16>
      %cst_12 = arith.constant dense<0.000000e+00> : vector<128x128xf32>
      %21 = tpu.matmul %18, %20, %cst_12 {dimension_numbers = #tpu.dot_dimension_numbers<[1], [0], [0], [1], [0, 0, 1, 1], [], []>} : vector<128x128xbf16>, vector<128x128xbf16>, vector<128x128xf32> -> vector<128x128xf32>
      %22 = arith.truncf %21 : vector<128x128xf32> to vector<128x128xbf16>
      %23 = arith.index_cast %1 : i32 to index
      %c0_13 = arith.constant 0 : index
      %24 = vector.load %arg7[%23, %c0_13] : memref<128x128xbf16, #tpu.memory_space<vmem>>, vector<128x128xbf16>
      tpu.vector_store %arg7[%23, %c0_13], %22 {strides = array<i32>} : memref<128x128xbf16, #tpu.memory_space<vmem>>, vector<128x128xbf16>,
      %c0_14 = arith.constant 0 : index
      %c0_15 = arith.constant 0 : index
      %25 = vector.load %arg6[%c0_14, %c0_15] : memref<128x128xf32, #tpu.memory_space<vmem>>, vector<128x128xf32>
      tpu.vector_store %arg6[%c0_14, %c0_15], %17 {strides = array<i32>} : memref<128x128xf32, #tpu.memory_space<vmem>>, vector<128x128xf32>,
    } else {
    }
    %c1_i32 = arith.constant 1 : i32
    %5 = arith.cmpi eq, %arg0, %c1_i32 : i32
    %6 = arith.extui %5 : i1 to i32
    %c0_i32_1 = arith.constant 0 : i32
    %7 = arith.cmpi ne, %6, %c0_i32_1 : i32
    scf.if %7 {
      %c0 = arith.constant 0 : index
      %c0_3 = arith.constant 0 : index
      %11 = vector.load %arg2[%c0, %c0_3] : memref<128x128xbf16, #tpu.memory_space<vmem>>, vector<128x128xbf16>
      %c0_4 = arith.constant 0 : index
      %c0_5 = arith.constant 0 : index
      %12 = vector.load %arg7[%c0_4, %c0_5] : memref<128x128xbf16, #tpu.memory_space<vmem>>, vector<128x128xbf16>
      %cst = arith.constant dense<0.000000e+00> : vector<128x128xf32>
      %13 = tpu.matmul %11, %12, %cst {dimension_numbers = #tpu.dot_dimension_numbers<[1], [0], [0], [1], [0, 0, 1, 1], [], []>} : vector<128x128xbf16>, vector<128x128xbf16>, vector<128x128xf32> -> vector<128x128xf32>
      %c0_6 = arith.constant 0 : index
      %c0_7 = arith.constant 0 : index
      %c0_8 = arith.constant 0 : index
      %14 = vector.load %arg5[%c0_6, %c0_7, %c0_8] : memref<1x1x128xf32, #tpu.memory_space<vmem>>, vector<1x1x128xf32>
      %15 = vector.shape_cast %14 : vector<1x1x128xf32> to vector<1x128xf32>
      %16 = vector.broadcast %15 : vector<1x128xf32> to vector<128x128xf32>
      %17 = arith.addf %13, %16 : vector<128x128xf32>
      %18 = arith.truncf %17 : vector<128x128xf32> to vector<128x128xbf16>
      %c0_9 = arith.constant 0 : index
      %c0_10 = arith.constant 0 : index
      %c0_11 = arith.constant 0 : index
      %19 = vector.load %arg4[%c0_9, %c0_10, %c0_11] : memref<1x128x128xbf16, #tpu.memory_space<vmem>>, vector<1x128x128xbf16>
      %20 = vector.shape_cast %19 : vector<1x128x128xbf16> to vector<128x128xbf16>
      %cst_12 = arith.constant dense<0.000000e+00> : vector<128x128xf32>
      %21 = tpu.matmul %18, %20, %cst_12 {dimension_numbers = #tpu.dot_dimension_numbers<[1], [0], [0], [1], [0, 0, 1, 1], [], []>} : vector<128x128xbf16>, vector<128x128xbf16>, vector<128x128xf32> -> vector<128x128xf32>
      %22 = arith.truncf %21 : vector<128x128xf32> to vector<128x128xbf16>
      %23 = arith.index_cast %1 : i32 to index
      %c0_13 = arith.constant 0 : index
      %24 = vector.load %arg8[%23, %c0_13] : memref<128x128xbf16, #tpu.memory_space<vmem>>, vector<128x128xbf16>
      tpu.vector_store %arg8[%23, %c0_13], %22 {strides = array<i32>} : memref<128x128xbf16, #tpu.memory_space<vmem>>, vector<128x128xbf16>,
      %c0_14 = arith.constant 0 : index
      %c0_15 = arith.constant 0 : index
      %25 = vector.load %arg6[%c0_14, %c0_15] : memref<128x128xf32, #tpu.memory_space<vmem>>, vector<128x128xf32>
      tpu.vector_store %arg6[%c0_14, %c0_15], %17 {strides = array<i32>} : memref<128x128xf32, #tpu.memory_space<vmem>>, vector<128x128xf32>,
    } else {
    }
    %c2_i32 = arith.constant 2 : i32
    %8 = arith.cmpi eq, %arg0, %c2_i32 : i32
    %9 = arith.extui %8 : i1 to i32
    %c0_i32_2 = arith.constant 0 : i32
    %10 = arith.cmpi ne, %9, %c0_i32_2 : i32
    scf.if %10 {
      %c0 = arith.constant 0 : index
      %c0_3 = arith.constant 0 : index
      %11 = vector.load %arg2[%c0, %c0_3] : memref<128x128xbf16, #tpu.memory_space<vmem>>, vector<128x128xbf16>
      %c0_4 = arith.constant 0 : index
      %c0_5 = arith.constant 0 : index
      %12 = vector.load %arg8[%c0_4, %c0_5] : memref<128x128xbf16, #tpu.memory_space<vmem>>, vector<128x128xbf16>
      %cst = arith.constant dense<0.000000e+00> : vector<128x128xf32>
      %13 = tpu.matmul %11, %12, %cst {dimension_numbers = #tpu.dot_dimension_numbers<[1], [0], [0], [1], [0, 0, 1, 1], [], []>} : vector<128x128xbf16>, vector<128x128xbf16>, vector<128x128xf32> -> vector<128x128xf32>
      %c0_6 = arith.constant 0 : index
      %c0_7 = arith.constant 0 : index
      %c0_8 = arith.constant 0 : index
      %14 = vector.load %arg5[%c0_6, %c0_7, %c0_8] : memref<1x1x128xf32, #tpu.memory_space<vmem>>, vector<1x1x128xf32>
      %15 = vector.shape_cast %14 : vector<1x1x128xf32> to vector<1x128xf32>
      %16 = vector.broadcast %15 : vector<1x128xf32> to vector<128x128xf32>
      %17 = arith.addf %13, %16 : vector<128x128xf32>
      %c0_9 = arith.constant 0 : index
      %c0_10 = arith.constant 0 : index
      %18 = vector.load %arg6[%c0_9, %c0_10] : memref<128x128xf32, #tpu.memory_space<vmem>>, vector<128x128xf32>
      tpu.vector_store %arg6[%c0_9, %c0_10], %17 {strides = array<i32>} : memref<128x128xf32, #tpu.memory_space<vmem>>, vector<128x128xf32>,
    } else {
    }
    return
  }
  func.func @transform_0(%arg0: i32, %arg1: i32) -> (i32, i32) {
    %c0_i32 = arith.constant 0 : i32
    %c0_i32_0 = arith.constant 0 : i32
    return %arg1, %c0_i32 : i32, i32
  }
  func.func @transform_1(%arg0: i32, %arg1: i32) -> (i32, i32) {
    %c0_i32 = arith.constant 0 : i32
    %c0_i32_0 = arith.constant 0 : i32
    %c0_i32_1 = arith.constant 0 : i32
    return %c0_i32, %c0_i32_0 : i32, i32
  }
  func.func @transform_2(%arg0: i32, %arg1: i32) -> (i32, i32, i32) {
    %c0_i32 = arith.constant 0 : i32
    %c0_i32_0 = arith.constant 0 : i32
    %c0_i32_1 = arith.constant 0 : i32
    return %arg0, %c0_i32, %c0_i32_0 : i32, i32, i32
  }
  func.func @transform_3(%arg0: i32, %arg1: i32) -> (i32, i32, i32) {
    %c0_i32 = arith.constant 0 : i32
    %c0_i32_0 = arith.constant 0 : i32
    %c0_i32_1 = arith.constant 0 : i32
    return %arg0, %c0_i32, %c0_i32_0 : i32, i32, i32
  }
  func.func @transform_4(%arg0: i32, %arg1: i32) -> (i32, i32) {
    %c0_i32 = arith.constant 0 : i32
    %c0_i32_0 = arith.constant 0 : i32
    return %arg1, %c0_i32 : i32, i32
  }
}

</mosaic_0001>

<llo_original>
// kernel: tpu_custom_call.1
$region0: #{tpu_custom_call.1}
  #allocation0 [shape = 'u32[]', space=smem, size = 0x4, offset = 0x4, fixed_abs, tag = 'smem constant byte address 0x4 - core index']
  #allocation1 [shape = 'u32[144,128]{1,0:T(1,128)}', space=vmem, size = 0x12000, scoped, tag = 'internal scratch']
  #allocation2 [shape = 'bf16[128,128]{1,0:T(16,128)(2,1)}', space=vmem, size = 0x8000, scoped, tag = 'scratch operand']
  #allocation3 [shape = 'bf16[128,128]{1,0:T(16,128)(2,1)}', space=vmem, size = 0x8000, scoped, tag = 'scratch operand']
  %s0 = inlined_call_operand.hbm [shape: bf16[128,128], index: 0, kind: input, shape index: {}]
  %s1 = inlined_call_operand.hbm [shape: bf16[128,128], index: 1, kind: input, shape index: {}]
  %s2 = inlined_call_operand.hbm [shape: bf16[3,128,128], index: 2, kind: input, shape index: {}]
  %s3 = inlined_call_operand.vmem [shape: f32[3,1,128], index: 3, kind: input, shape index: {}]
  %s4 = inlined_call_operand.hbm [shape: f32[128,128], index: 4, kind: output, shape index: {}]
  %s5 = sld [smem:[#allocation0]]
  $region73: #{tpu_custom_call.1} parent=0
    _
  %s7 = ssub.s32 1, %s5
  %s8 = scalar_select 0, %s7, %s5
  $region1: #{tpu_custom_call.1} parent=0
    #allocation4 [shape = 'u8[32768]{0}', space=vmem, size = 0x8000, scoped, tag = 'input window, operand 0, single buffered']
    #allocation5 [shape = 's32[2]{0}', space=sflag, size = 0x8, scoped, tag = 'scoped memory for tpu_custom_call.1']
    #allocation6 [shape = 's32[2]{0}', space=sflag, size = 0x8, scoped, tag = 'scoped memory for tpu_custom_call.1']
    #allocation7 [shape = 'u8[32768]{0}', space=vmem, size = 0x8000, scoped, tag = 'input window, operand 1, single buffered']
    #allocation8 [shape = 's32[1]{0}', space=sflag, size = 0x4, scoped, tag = 'scoped memory for tpu_custom_call.1']
    #allocation9 [shape = 'u8[65536]{0}', space=vmem, size = 0x10000, scoped, tag = 'input window, operand 2']
    #allocation10 [shape = 'u8[65536]{0}', space=vmem, size = 0x10000, scoped, tag = 'output window, operand 0, single buffered']
    %9 = vsyncpa [#allocation5], 0
    %10 = vsyncpa [#allocation8], 0
    %11 = vsyncpa [#allocation6], 0
    loop: start=0, step=1, limit=5
    $region2: #{tpu_custom_call.1} parent=1 // loop_pre_header
      _
    $region3: #{tpu_custom_call.1} parent=1 // loop_header
      %s13 = sphi 0, %s17
      %p14 = scmp.ge.s32.totalorder %s13, 5
      %s20 = sphi 0, %s32
      %s21 = sphi 0, %s28
      %s22 = sphi 0, %s20
      %s23 = sphi 0, %s21
      %s24 = sphi 0, %s22
      %s25 = sphi 0, %s23
      %s35 = sphi 0, %s37
      %s38 = sphi 0, %s35
      %s39 = sphi 0, %s38
      %s55 = sphi 0, %s39
      %s59 = sphi 0, %s59
      %s61 = sphi 0, %s59
      %s62 = sphi 0, %s61
      %s76 = sphi 0, %s62
      %s82 = sphi 0, %s84
      %s85 = sphi 0, %s82
      %s86 = sphi 0, %s85
      %s102 = sphi 0, %s86
      %s108 = sphi 0, %s110
      %s111 = sphi 0, %s108
      %s112 = sphi 0, %s111
      %s128 = sphi 0, %s112
      %s134 = sphi 0, %s136
      %s137 = sphi 0, %s134
      %s138 = sphi 0, %s137
      %s154 = sphi 0, %s138
    $region4: #{tpu_custom_call.1} parent=1 // loop_header_branch
      %16 = sbr.rel (%p14) target = $region8
    $region5: #{tpu_custom_call.1} parent=1 // loop_body
      %s18 = ssub.s32 %s13, 1
      %s19 = ssub.s32 %s13, 2
      %s26 = sadd.s32 1, %s21
      %p27 = scmp.ge.s32.totalorder %s26, 1
      %s28 = scalar_select %p27, 0, %s26
      %s29 = sadd.s32 1, %s20
      %s30 = scalar_select %p27, %s29, %s20
      %p31 = scmp.ge.s32.totalorder %s30, 3
      %s32 = scalar_select %p31, 0, %s30
      %s33 = ssub.s32 %s21, %s28
      %p34 = scmp.eq.s32.totalorder %s33, 0
      %s36 = sadd.s32 %s35, 1
      %s37 = scalar_select %p34, %s35, %s36
      %p40 = pneg %p34
      %p41 = scmp.eq.s32.totalorder %s13, 2
      %p42 = por %p40, %p41
      %p43 = scmp.ne.s32.totalorder %s35, %s38
      %p44 = scmp.eq.s32.totalorder %s13, 0
      %p45 = por %p43, %p44
      %p46 = scmp.ne.s32.totalorder %s35, %s38
      %p47 = scmp.eq.s32.totalorder %s18, 2
      %p48 = por %p46, %p47
      %p49 = scmp.ne.s32.totalorder %s38, %s39
      %p50 = scmp.eq.s32.totalorder %s18, 0
      %p51 = por %p49, %p50
      %p52 = scmp.ne.s32.totalorder %s38, %s39
      %p53 = scmp.eq.s32.totalorder %s19, 2
      %p54 = por %p52, %p53
      %p56 = scmp.ne.s32.totalorder %s39, %s55
      %p57 = scmp.eq.s32.totalorder %s19, 0
      %p58 = por %p56, %p57
      %s60 = sadd.s32 %s59, 1
      %p63 = scmp.eq.s32.totalorder %s13, 2
      %p64 = scmp.ne.s32.totalorder %s59, %s61
      %p65 = scmp.eq.s32.totalorder %s13, 0
      %p66 = por %p64, %p65
      %p67 = scmp.ne.s32.totalorder %s59, %s61
      %p68 = scmp.eq.s32.totalorder %s18, 2
      %p69 = por %p67, %p68
      %p70 = scmp.ne.s32.totalorder %s61, %s62
      %p71 = scmp.eq.s32.totalorder %s18, 0
      %p72 = por %p70, %p71
      %p73 = scmp.ne.s32.totalorder %s61, %s62
      %p74 = scmp.eq.s32.totalorder %s19, 2
      %p75 = por %p73, %p74
      %p77 = scmp.ne.s32.totalorder %s62, %s76
      %p78 = scmp.eq.s32.totalorder %s19, 0
      %p79 = por %p77, %p78
      %s80 = ssub.s32 %s20, %s32
      %p81 = scmp.eq.s32.totalorder %s80, 0
      %s83 = sadd.s32 %s82, 1
      %s84 = scalar_select %p81, %s82, %s83
      %p87 = pneg %p81
      %p88 = scmp.eq.s32.totalorder %s13, 2
      %p89 = por %p87, %p88
      %p90 = scmp.ne.s32.totalorder %s82, %s85
      %p91 = scmp.eq.s32.totalorder %s13, 0
      %p92 = por %p90, %p91
      %p93 = scmp.ne.s32.totalorder %s82, %s85
      %p94 = scmp.eq.s32.totalorder %s18, 2
      %p95 = por %p93, %p94
      %p96 = scmp.ne.s32.totalorder %s85, %s86
      %p97 = scmp.eq.s32.totalorder %s18, 0
      %p98 = por %p96, %p97
      %p99 = scmp.ne.s32.totalorder %s85, %s86
      %p100 = scmp.eq.s32.totalorder %s19, 2
      %p101 = por %p99, %p100
      %p103 = scmp.ne.s32.totalorder %s86, %s102
      %p104 = scmp.eq.s32.totalorder %s19, 0
      %p105 = por %p103, %p104
      %s106 = ssub.s32 %s20, %s32
      %p107 = scmp.eq.s32.totalorder %s106, 0
      %s109 = sadd.s32 %s108, 1
      %s110 = scalar_select %p107, %s108, %s109
      %p113 = pneg %p107
      %p114 = scmp.eq.s32.totalorder %s13, 2
      %p115 = por %p113, %p114
      %p116 = scmp.ne.s32.totalorder %s108, %s111
      %p117 = scmp.eq.s32.totalorder %s13, 0
      %p118 = por %p116, %p117
      %p119 = scmp.ne.s32.totalorder %s108, %s111
      %p120 = scmp.eq.s32.totalorder %s18, 2
      %p121 = por %p119, %p120
      %p122 = scmp.ne.s32.totalorder %s111, %s112
      %p123 = scmp.eq.s32.totalorder %s18, 0
      %p124 = por %p122, %p123
      %p125 = scmp.ne.s32.totalorder %s111, %s112
      %p126 = scmp.eq.s32.totalorder %s19, 2
      %p127 = por %p125, %p126
      %p129 = scmp.ne.s32.totalorder %s112, %s128
      %p130 = scmp.eq.s32.totalorder %s19, 0
      %p131 = por %p129, %p130
      %s132 = ssub.s32 %s21, %s28
      %p133 = scmp.eq.s32.totalorder %s132, 0
      %s135 = sadd.s32 %s134, 1
      %s136 = scalar_select %p133, %s134, %s135
      %p139 = pneg %p133
      %p140 = scmp.eq.s32.totalorder %s13, 2
      %p141 = por %p139, %p140
      %p142 = scmp.ne.s32.totalorder %s134, %s137
      %p143 = scmp.eq.s32.totalorder %s13, 0
      %p144 = por %p142, %p143
      %p145 = scmp.ne.s32.totalorder %s134, %s137
      %p146 = scmp.eq.s32.totalorder %s18, 2
      %p147 = por %p145, %p146
      %p148 = scmp.ne.s32.totalorder %s137, %s138
      %p149 = scmp.eq.s32.totalorder %s18, 0
      %p150 = por %p148, %p149
      %p151 = scmp.ne.s32.totalorder %s137, %s138
      %p152 = scmp.eq.s32.totalorder %s19, 2
      %p153 = por %p151, %p152
      %p155 = scmp.ne.s32.totalorder %s138, %s154
      %p156 = scmp.eq.s32.totalorder %s19, 0
      %p157 = por %p155, %p156
      %p158 = scmp.le.s32.totalorder 1, %s13
      %p159 = scmp.lt.s32.totalorder %s13, 4
      %p160 = pnand %p158, %p159
      %p161 = pneg %p160
      // Predicated region
      $region9: #{tpu_custom_call.1} parent=5 // pred_check
        _
      $region10: #{tpu_custom_call.1} parent=5 // pred_check_branch
        %163 = sbr.rel (%p160) target = $region12
      $region11: #{tpu_custom_call.1} parent=5 // pred_region
        %s164 = ssub.s32 %s13, 1
        // Predicated region
        $region13: #{tpu_custom_call.1} parent=11 // pred_check
          %p165 = pneg %p51
        $region14: #{tpu_custom_call.1} parent=11 // pred_check_branch
          %167 = sbr.rel (%p165) target = $region16
        $region15: #{tpu_custom_call.1} parent=11 // pred_region
          %s168 = smul.u32 16, %s23
          %s170 = ssub.s32 1024, 1024
          %171 = vsyncadd [#allocation5], %s170
          %s172 = smul.addr %s168, 64
          %s173 = scalar_lea.hbm %s0, %s172
          %s174 = sshll.u32 [#allocation4], 4
          %s175 = int_to_ptr.vmem [resolvable:$true] %s174
          %180 = dma.hbm_to_vmem [thread:$0]  %s173, 1024, %s175, [#allocation5], 64, 64, 4
        $region16: #{tpu_custom_call.1} parent=11 // pred_fallthru
          _
        // Predicated region
        $region17: #{tpu_custom_call.1} parent=11 // pred_check
          %p181 = pneg %p72
        $region18: #{tpu_custom_call.1} parent=11 // pred_check_branch
          %183 = sbr.rel (%p181) target = $region20
        $region19: #{tpu_custom_call.1} parent=11 // pred_region
          %s185 = ssub.s32 1024, 1024
          %186 = vsyncadd [#allocation8], %s185
          %s187 = sshll.u32 [#allocation7], 4
          %s188 = int_to_ptr.vmem [resolvable:$true] %s187
          %193 = dma.hbm_to_vmem [thread:$0]  %s1, 1024, %s188, [#allocation8], 64, 64, 4
        $region20: #{tpu_custom_call.1} parent=11 // pred_fallthru
          _
      $region12: #{tpu_custom_call.1} parent=5 // pred_fallthru
        _
      %p194 = scmp.lt.s32.totalorder %s13, 3
      // Predicated region
      $region21: #{tpu_custom_call.1} parent=5 // pred_check
        %p195 = pneg %p194
      $region22: #{tpu_custom_call.1} parent=5 // pred_check_branch
        %197 = sbr.rel (%p195) target = $region24
      $region23: #{tpu_custom_call.1} parent=5 // pred_region
        // Predicated region
        $region25: #{tpu_custom_call.1} parent=23 // pred_check
          %p198 = pneg %p92
        $region26: #{tpu_custom_call.1} parent=23 // pred_check_branch
          %200 = sbr.rel (%p198) target = $region28
        $region27: #{tpu_custom_call.1} parent=23 // pred_region
          %s201 = sand.u32 %s13, 1
          %s202 = scalar_lea.sflag [#allocation5], %s201
          %s203 = sand.u32 %s82, 1
          %s204 = smul.addr %s203, 64
          %s205 = scalar_lea.vmem [#allocation9], %s204
          %s207 = ssub.s32 1024, 1024
          %208 = vsyncadd %s202, %s207
          %s209 = smul.addr %s20, 16
          %s210 = smul.addr %s209, 64
          %s211 = scalar_lea.hbm %s2, %s210
          %s212 = sshll.u32 %s205, 4
          %s213 = int_to_ptr.vmem [resolvable:$true] %s212
          %218 = dma.hbm_to_vmem [thread:$0]  %s211, 1024, %s213, %s202, 64, 64, 4
        $region28: #{tpu_custom_call.1} parent=23 // pred_fallthru
          _
        // Predicated region
        $region29: #{tpu_custom_call.1} parent=23 // pred_check
          %p219 = pneg %p118
        $region30: #{tpu_custom_call.1} parent=23 // pred_check_branch
          %221 = sbr.rel (%p219) target = $region32
        $region31: #{tpu_custom_call.1} parent=23 // pred_region
          %p222 = scmp.lt.s32.totalorder %s20, 2
          %s223 = scalar_select %p222, %s20, 2
          %s224 = scalar_lea.vmem %s3, %s223
        $region32: #{tpu_custom_call.1} parent=23 // pred_fallthru
          _
      $region24: #{tpu_custom_call.1} parent=5 // pred_fallthru
        _
      %p225 = scmp.le.s32.totalorder 1, %s13
      %p226 = scmp.lt.s32.totalorder %s13, 4
      %p227 = pnand %p225, %p226
      %p228 = pneg %p227
      // Predicated region
      $region33: #{tpu_custom_call.1} parent=5 // pred_check
        _
      $region34: #{tpu_custom_call.1} parent=5 // pred_check_branch
        %230 = sbr.rel (%p227) target = $region36
      $region35: #{tpu_custom_call.1} parent=5 // pred_region
        %s231 = ssub.s32 %s13, 1
        // Predicated region
        $region37: #{tpu_custom_call.1} parent=35 // pred_check
          %p232 = pneg %p51
        $region38: #{tpu_custom_call.1} parent=35 // pred_check_branch
          %234 = sbr.rel (%p232) target = $region40
        $region39: #{tpu_custom_call.1} parent=35 // pred_region
          %235 = dma.done [#allocation5], 1024
        $region40: #{tpu_custom_call.1} parent=35 // pred_fallthru
          _
        // Predicated region
        $region41: #{tpu_custom_call.1} parent=35 // pred_check
          %p236 = pneg %p72
        $region42: #{tpu_custom_call.1} parent=35 // pred_check_branch
          %238 = sbr.rel (%p236) target = $region44
        $region43: #{tpu_custom_call.1} parent=35 // pred_region
          %239 = dma.done [#allocation8], 1024
        $region44: #{tpu_custom_call.1} parent=35 // pred_fallthru
          _
        %s240 = sand.u32 %s18, 1
        %s241 = scalar_lea.sflag [#allocation5], %s240
        %s242 = sand.u32 %s85, 1
        %s243 = smul.addr %s242, 64
        %s244 = scalar_lea.vmem [#allocation9], %s243
        // Predicated region
        $region45: #{tpu_custom_call.1} parent=35 // pred_check
          %p245 = pneg %p98
        $region46: #{tpu_custom_call.1} parent=35 // pred_check_branch
          %247 = sbr.rel (%p245) target = $region48
        $region47: #{tpu_custom_call.1} parent=35 // pred_region
          %248 = dma.done %s241, 1024
        $region48: #{tpu_custom_call.1} parent=35 // pred_fallthru
          _
        %p249 = pneg %p51
        %p250 = pneg %p48
        %p251 = pneg %p72
        %p252 = pneg %p69
        %s253 = sand.u32 %s18, 1
        %s254 = scalar_lea.sflag [#allocation5], %s253
        %s255 = sand.u32 %s85, 1
        %s256 = smul.addr %s255, 64
        %s257 = scalar_lea.vmem [#allocation9], %s256
        %p258 = pneg %p98
        %p259 = pneg %p95
        %p260 = scmp.lt.s32.totalorder %s22, 2
        %s261 = scalar_select %p260, %s22, 2
        %s262 = scalar_lea.vmem %s3, %s261
        %p263 = pneg %p124
        %p264 = pneg %p121
        %p265 = pneg %p150
        %p266 = pneg %p147
        %s267 = smul.u32 16, %s23
        %p268 = scmp.lt.s32.totalorder %s22, 2
        %s269 = scalar_select %p268, %s22, 2
        %s270 = scalar_lea.vmem %s3, %s269
        %s271 = smul.u32 16, %s23
        %s273 = smul.u32 %s23, 128
        %p274 = scmp.eq.s32.totalorder %s22, 0
        // Predicated region
        $region49: #{tpu_custom_call.1} parent=35 // pred_check
          %p275 = pneg %p274
        $region50: #{tpu_custom_call.1} parent=35 // pred_check_branch
          %277 = sbr.rel (%p275) target = $region52
        $region51: #{tpu_custom_call.1} parent=35 // pred_region
          %v278 = vld [vmem:[#allocation4] sm:$0xf]
          %v279 = vld [vmem:[#allocation4 + $0x4] sm:$0xf]
          %v280 = vld [vmem:[#allocation4 + $0x8] sm:$0xf]
          %v281 = vld [vmem:[#allocation4 + $0xc] sm:$0xf]
          %v282 = vld [vmem:[#allocation4 + $0x10] sm:$0xf]
          %v283 = vld [vmem:[#allocation4 + $0x14] sm:$0xf]
          %v284 = vld [vmem:[#allocation4 + $0x18] sm:$0xf]
          %v285 = vld [vmem:[#allocation4 + $0x1c] sm:$0xf]
          %v286 = vld [vmem:[#allocation4 + $0x20] sm:$0xf]
          %v287 = vld [vmem:[#allocation4 + $0x24] sm:$0xf]
          %v288 = vld [vmem:[#allocation4 + $0x28] sm:$0xf]
          %v289 = vld [vmem:[#allocation4 + $0x2c] sm:$0xf]
          %v290 = vld [vmem:[#allocation4 + $0x30] sm:$0xf]
          %v291 = vld [vmem:[#allocation4 + $0x34] sm:$0xf]
          %v292 = vld [vmem:[#allocation4 + $0x38] sm:$0xf]
          %v293 = vld [vmem:[#allocation4 + $0x3c] sm:$0xf]
          %v294 = vld [vmem:[#allocation7] sm:$0xf]
          %v295 = vld [vmem:[#allocation7 + $0x4] sm:$0xf]
          %v296 = vld [vmem:[#allocation7 + $0x8] sm:$0xf]
          %v297 = vld [vmem:[#allocation7 + $0xc] sm:$0xf]
          %v298 = vld [vmem:[#allocation7 + $0x10] sm:$0xf]
          %v299 = vld [vmem:[#allocation7 + $0x14] sm:$0xf]
          %v300 = vld [vmem:[#allocation7 + $0x18] sm:$0xf]
          %v301 = vld [vmem:[#allocation7 + $0x1c] sm:$0xf]
          %v302 = vld [vmem:[#allocation7 + $0x20] sm:$0xf]
          %v303 = vld [vmem:[#allocation7 + $0x24] sm:$0xf]
          %v304 = vld [vmem:[#allocation7 + $0x28] sm:$0xf]
          %v305 = vld [vmem:[#allocation7 + $0x2c] sm:$0xf]
          %v306 = vld [vmem:[#allocation7 + $0x30] sm:$0xf]
          %v307 = vld [vmem:[#allocation7 + $0x34] sm:$0xf]
          %v308 = vld [vmem:[#allocation7 + $0x38] sm:$0xf]
          %v309 = vld [vmem:[#allocation7 + $0x3c] sm:$0xf]
          %v310 = vld [vmem:[%s270] sm:$0x1]
          %v312 = vlaneseq
          %v313 = vshrl.u32 %v312, 7
          %v314 = vsub.s32 0, %v313
          %v315 = vrot.slane %v310, %v314
          %v333 = vunpack.c.l.b16 %v278
          %v334 = vunpack.c.l.b16 %v279
          %v335 = vunpack.c.l.b16 %v280
          %v336 = vunpack.c.l.b16 %v281
          %v337 = vunpack.c.l.b16 %v282
          %v338 = vunpack.c.l.b16 %v283
          %v339 = vunpack.c.l.b16 %v284
          %v340 = vunpack.c.l.b16 %v285
          %v341 = vunpack.c.l.b16 %v286
          %v342 = vunpack.c.l.b16 %v287
          %v343 = vunpack.c.l.b16 %v288
          %v344 = vunpack.c.l.b16 %v289
          %v345 = vunpack.c.l.b16 %v290
          %v346 = vunpack.c.l.b16 %v291
          %v347 = vunpack.c.l.b16 %v292
          %v348 = vunpack.c.l.b16 %v293
          %v349 = vpack.c.b16 %v334, %v333
          %v350 = vpack.c.b16 %v336, %v335
          %v351 = vpack.c.b16 %v338, %v337
          %v352 = vpack.c.b16 %v340, %v339
          %v353 = vpack.c.b16 %v342, %v341
          %v354 = vpack.c.b16 %v344, %v343
          %v355 = vpack.c.b16 %v346, %v345
          %v356 = vpack.c.b16 %v348, %v347
          %v381 = vunpack.c.l.b16 %v294
          %v382 = vunpack.c.l.b16 %v295
          %v383 = vunpack.c.l.b16 %v296
          %v384 = vunpack.c.l.b16 %v297
          %v385 = vunpack.c.l.b16 %v298
          %v386 = vunpack.c.l.b16 %v299
          %v387 = vunpack.c.l.b16 %v300
          %v388 = vunpack.c.l.b16 %v301
          %v389 = vunpack.c.l.b16 %v302
          %v390 = vunpack.c.l.b16 %v303
          %v391 = vunpack.c.l.b16 %v304
          %v392 = vunpack.c.l.b16 %v305
          %v393 = vunpack.c.l.b16 %v306
          %v394 = vunpack.c.l.b16 %v307
          %v395 = vunpack.c.l.b16 %v308
          %v396 = vunpack.c.l.b16 %v309
          %v397 = vpack.c.b16 %v382, %v381
          %v398 = vpack.c.b16 %v384, %v383
          %v399 = vpack.c.b16 %v386, %v385
          %v400 = vpack.c.b16 %v388, %v387
          %v401 = vpack.c.b16 %v390, %v389
          %v402 = vpack.c.b16 %v392, %v391
          %v403 = vpack.c.b16 %v394, %v393
          %v404 = vpack.c.b16 %v396, %v395
          %413 = vmatprep.subr.bf16.mxu0 0
          %414 = vmatpush1.bf16.msra.mxu0 %v397
          %415 = vmatprep.subr.bf16.mxu0 0
          %416 = vmatpush1.bf16.msra.mxu0 %v398
          %417 = vmatprep.subr.bf16.mxu0 0
          %418 = vmatpush1.bf16.msra.mxu0 %v399
          %419 = vmatprep.subr.bf16.mxu0 0
          %420 = vmatpush1.bf16.msra.mxu0 %v400
          %421 = vmatprep.subr.bf16.mxu0 0
          %422 = vmatpush1.bf16.msra.mxu0 %v401
          %423 = vmatprep.subr.bf16.mxu0 0
          %424 = vmatpush1.bf16.msra.mxu0 %v402
          %425 = vmatprep.subr.bf16.mxu0 0
          %426 = vmatpush1.bf16.msra.mxu0 %v403
          %427 = vmatprep.subr.bf16.mxu0 0
          %428 = vmatpush1.bf16.msra.mxu0 %v404
          %429 = vmatprep.subr.bf16.mxu0 0
          %430 = vmatpush1.bf16.msra.mxu0 0
          %431 = vmatprep.subr.bf16.mxu0 0
          %432 = vmatpush1.bf16.msra.mxu0 0
          %433 = vmatprep.subr.bf16.mxu0 0
          %434 = vmatpush1.bf16.msra.mxu0 0
          %435 = vmatprep.subr.bf16.mxu0 0
          %436 = vmatpush1.bf16.msra.mxu0 0
          %437 = vmatprep.subr.bf16.mxu0 0
          %438 = vmatpush1.bf16.msra.mxu0 0
          %439 = vmatprep.subr.bf16.mxu0 0
          %440 = vmatpush1.bf16.msra.mxu0 0
          %441 = vmatprep.subr.bf16.mxu0 0
          %442 = vmatpush1.bf16.msra.mxu0 0
          %443 = vmatprep.subr.bf16.mxu0 0
          %444 = vmatpush1.bf16.msra.mxu0 0
          %445 = vmatprep.mubr.bf16.mxu0 0
          %446 = vmatmul.mubr.bf16.gmra.mrb[0].mxu0 %v349
          %v447 = vpop.f32.mrb[0].mxu0
          %v448 = vadd.f32 %v315, %v447
          %v449 = vpop.f32.mrb[0].mxu0
          %v450 = vpop.f32.mrb[0].mxu0
          %v451 = vadd.f32 %v315, %v450
          %v452 = vpop.f32.mrb[0].mxu0
          %453 = vmatprep.mubr.bf16.mxu0 0
          %454 = vmatmul.mubr.bf16.gmra.mrb[0].mxu0 %v350
          %v455 = vpop.f32.mrb[0].mxu0
          %v456 = vadd.f32 %v315, %v455
          %v457 = vpop.f32.mrb[0].mxu0
          %v458 = vpop.f32.mrb[0].mxu0
          %v459 = vadd.f32 %v315, %v458
          %v460 = vpop.f32.mrb[0].mxu0
          %461 = vmatprep.mubr.bf16.mxu0 0
          %462 = vmatmul.mubr.bf16.gmra.mrb[0].mxu0 %v351
          %v463 = vpop.f32.mrb[0].mxu0
          %v464 = vadd.f32 %v315, %v463
          %v465 = vpop.f32.mrb[0].mxu0
          %v466 = vpop.f32.mrb[0].mxu0
          %v467 = vadd.f32 %v315, %v466
          %v468 = vpop.f32.mrb[0].mxu0
          %469 = vmatprep.mubr.bf16.mxu0 0
          %470 = vmatmul.mubr.bf16.gmra.mrb[0].mxu0 %v352
          %v471 = vpop.f32.mrb[0].mxu0
          %v472 = vadd.f32 %v315, %v471
          %v473 = vpop.f32.mrb[0].mxu0
          %v474 = vpop.f32.mrb[0].mxu0
          %v475 = vadd.f32 %v315, %v474
          %v476 = vpop.f32.mrb[0].mxu0
          %477 = vmatprep.mubr.bf16.mxu0 0
          %478 = vmatmul.mubr.bf16.gmra.mrb[0].mxu0 %v353
          %v479 = vpop.f32.mrb[0].mxu0
          %v480 = vadd.f32 %v315, %v479
          %v481 = vpop.f32.mrb[0].mxu0
          %v482 = vpop.f32.mrb[0].mxu0
          %v483 = vadd.f32 %v315, %v482
          %v484 = vpop.f32.mrb[0].mxu0
          %485 = vmatprep.mubr.bf16.mxu0 0
          %486 = vmatmul.mubr.bf16.gmra.mrb[0].mxu0 %v354
          %v487 = vpop.f32.mrb[0].mxu0
          %v488 = vadd.f32 %v315, %v487
          %v489 = vpop.f32.mrb[0].mxu0
          %v490 = vpop.f32.mrb[0].mxu0
          %v491 = vadd.f32 %v315, %v490
          %v492 = vpop.f32.mrb[0].mxu0
          %493 = vmatprep.mubr.bf16.mxu0 0
          %494 = vmatmul.mubr.bf16.gmra.mrb[0].mxu0 %v355
          %v495 = vpop.f32.mrb[0].mxu0
          %v496 = vadd.f32 %v315, %v495
          %v497 = vpop.f32.mrb[0].mxu0
          %v498 = vpop.f32.mrb[0].mxu0
          %v499 = vadd.f32 %v315, %v498
          %v500 = vpop.f32.mrb[0].mxu0
          %501 = vmatprep.mubr.bf16.mxu0 0
          %502 = vmatmul.mubr.bf16.gmra.mrb[0].mxu0 %v356
          %v503 = vpop.f32.mrb[0].mxu0
          %v504 = vadd.f32 %v315, %v503
          %v505 = vpop.f32.mrb[0].mxu0
          %v506 = vpop.f32.mrb[0].mxu0
          %v507 = vadd.f32 %v315, %v506
          %v508 = vpop.f32.mrb[0].mxu0
          %509 = vdwg.mxu0
          %v510 = vpack.c.bf16 %v451, %v448
          %v511 = vpack.c.bf16 %v459, %v456
          %v512 = vpack.c.bf16 %v467, %v464
          %v513 = vpack.c.bf16 %v475, %v472
          %v514 = vpack.c.bf16 %v483, %v480
          %v515 = vpack.c.bf16 %v491, %v488
          %v516 = vpack.c.bf16 %v499, %v496
          %v517 = vpack.c.bf16 %v507, %v504
          %v518 = vld [vmem:[%s244] sm:$0xf]
          %v519 = vld [vmem:[%s244 + $0x4] sm:$0xf]
          %v520 = vld [vmem:[%s244 + $0x8] sm:$0xf]
          %v521 = vld [vmem:[%s244 + $0xc] sm:$0xf]
          %v522 = vld [vmem:[%s244 + $0x10] sm:$0xf]
          %v523 = vld [vmem:[%s244 + $0x14] sm:$0xf]
          %v524 = vld [vmem:[%s244 + $0x18] sm:$0xf]
          %v525 = vld [vmem:[%s244 + $0x1c] sm:$0xf]
          %v526 = vld [vmem:[%s244 + $0x20] sm:$0xf]
          %v527 = vld [vmem:[%s244 + $0x24] sm:$0xf]
          %v528 = vld [vmem:[%s244 + $0x28] sm:$0xf]
          %v529 = vld [vmem:[%s244 + $0x2c] sm:$0xf]
          %v530 = vld [vmem:[%s244 + $0x30] sm:$0xf]
          %v531 = vld [vmem:[%s244 + $0x34] sm:$0xf]
          %v532 = vld [vmem:[%s244 + $0x38] sm:$0xf]
          %v533 = vld [vmem:[%s244 + $0x3c] sm:$0xf]
          %v550 = vunpack.c.l.b16 %v518
          %v551 = vunpack.c.l.b16 %v519
          %v552 = vunpack.c.l.b16 %v520
          %v553 = vunpack.c.l.b16 %v521
          %v554 = vunpack.c.l.b16 %v522
          %v555 = vunpack.c.l.b16 %v523
          %v556 = vunpack.c.l.b16 %v524
          %v557 = vunpack.c.l.b16 %v525
          %v558 = vunpack.c.l.b16 %v526
          %v559 = vunpack.c.l.b16 %v527
          %v560 = vunpack.c.l.b16 %v528
          %v561 = vunpack.c.l.b16 %v529
          %v562 = vunpack.c.l.b16 %v530
          %v563 = vunpack.c.l.b16 %v531
          %v564 = vunpack.c.l.b16 %v532
          %v565 = vunpack.c.l.b16 %v533
          %v566 = vpack.c.b16 %v551, %v550
          %v567 = vpack.c.b16 %v553, %v552
          %v568 = vpack.c.b16 %v555, %v554
          %v569 = vpack.c.b16 %v557, %v556
          %v570 = vpack.c.b16 %v559, %v558
          %v571 = vpack.c.b16 %v561, %v560
          %v572 = vpack.c.b16 %v563, %v562
          %v573 = vpack.c.b16 %v565, %v564
          %582 = vmatprep.subr.bf16.mxu0 0
          %583 = vmatpush1.bf16.msra.mxu0 %v566
          %584 = vmatprep.subr.bf16.mxu0 0
          %585 = vmatpush1.bf16.msra.mxu0 %v567
          %586 = vmatprep.subr.bf16.mxu0 0
          %587 = vmatpush1.bf16.msra.mxu0 %v568
          %588 = vmatprep.subr.bf16.mxu0 0
          %589 = vmatpush1.bf16.msra.mxu0 %v569
          %590 = vmatprep.subr.bf16.mxu0 0
          %591 = vmatpush1.bf16.msra.mxu0 %v570
          %592 = vmatprep.subr.bf16.mxu0 0
          %593 = vmatpush1.bf16.msra.mxu0 %v571
          %594 = vmatprep.subr.bf16.mxu0 0
          %595 = vmatpush1.bf16.msra.mxu0 %v572
          %596 = vmatprep.subr.bf16.mxu0 0
          %597 = vmatpush1.bf16.msra.mxu0 %v573
          %598 = vmatprep.subr.bf16.mxu0 0
          %599 = vmatpush1.bf16.msra.mxu0 0
          %600 = vmatprep.subr.bf16.mxu0 0
          %601 = vmatpush1.bf16.msra.mxu0 0
          %602 = vmatprep.subr.bf16.mxu0 0
          %603 = vmatpush1.bf16.msra.mxu0 0
          %604 = vmatprep.subr.bf16.mxu0 0
          %605 = vmatpush1.bf16.msra.mxu0 0
          %606 = vmatprep.subr.bf16.mxu0 0
          %607 = vmatpush1.bf16.msra.mxu0 0
          %608 = vmatprep.subr.bf16.mxu0 0
          %609 = vmatpush1.bf16.msra.mxu0 0
          %610 = vmatprep.subr.bf16.mxu0 0
          %611 = vmatpush1.bf16.msra.mxu0 0
          %612 = vmatprep.subr.bf16.mxu0 0
          %613 = vmatpush1.bf16.msra.mxu0 0
          %614 = vmatprep.mubr.bf16.mxu0 0
          %615 = vmatmul.mubr.bf16.gmra.mrb[0].mxu0 %v510
          %v616 = vpop.f32.mrb[0].mxu0
          %v617 = vadd.f32 0.0, %v616
          %v618 = vpop.f32.mrb[0].mxu0
          %v619 = vpop.f32.mrb[0].mxu0
          %v620 = vadd.f32 0.0, %v619
          %v621 = vpop.f32.mrb[0].mxu0
          %622 = vmatprep.mubr.bf16.mxu0 0
          %623 = vmatmul.mubr.bf16.gmra.mrb[0].mxu0 %v511
          %v624 = vpop.f32.mrb[0].mxu0
          %v625 = vadd.f32 0.0, %v624
          %v626 = vpop.f32.mrb[0].mxu0
          %v627 = vpop.f32.mrb[0].mxu0
          %v628 = vadd.f32 0.0, %v627
          %v629 = vpop.f32.mrb[0].mxu0
          %630 = vmatprep.mubr.bf16.mxu0 0
          %631 = vmatmul.mubr.bf16.gmra.mrb[0].mxu0 %v512
          %v632 = vpop.f32.mrb[0].mxu0
          %v633 = vadd.f32 0.0, %v632
          %v634 = vpop.f32.mrb[0].mxu0
          %v635 = vpop.f32.mrb[0].mxu0
          %v636 = vadd.f32 0.0, %v635
          %v637 = vpop.f32.mrb[0].mxu0
          %638 = vmatprep.mubr.bf16.mxu0 0
          %639 = vmatmul.mubr.bf16.gmra.mrb[0].mxu0 %v513
          %v640 = vpop.f32.mrb[0].mxu0
          %v641 = vadd.f32 0.0, %v640
          %v642 = vpop.f32.mrb[0].mxu0
          %v643 = vpop.f32.mrb[0].mxu0
          %v644 = vadd.f32 0.0, %v643
          %v645 = vpop.f32.mrb[0].mxu0
          %646 = vmatprep.mubr.bf16.mxu0 0
          %647 = vmatmul.mubr.bf16.gmra.mrb[0].mxu0 %v514
          %v648 = vpop.f32.mrb[0].mxu0
          %v649 = vadd.f32 0.0, %v648
          %v650 = vpop.f32.mrb[0].mxu0
          %v651 = vpop.f32.mrb[0].mxu0
          %v652 = vadd.f32 0.0, %v651
          %v653 = vpop.f32.mrb[0].mxu0
          %654 = vmatprep.mubr.bf16.mxu0 0
          %655 = vmatmul.mubr.bf16.gmra.mrb[0].mxu0 %v515
          %v656 = vpop.f32.mrb[0].mxu0
          %v657 = vadd.f32 0.0, %v656
          %v658 = vpop.f32.mrb[0].mxu0
          %v659 = vpop.f32.mrb[0].mxu0
          %v660 = vadd.f32 0.0, %v659
          %v661 = vpop.f32.mrb[0].mxu0
          %662 = vmatprep.mubr.bf16.mxu0 0
          %663 = vmatmul.mubr.bf16.gmra.mrb[0].mxu0 %v516
          %v664 = vpop.f32.mrb[0].mxu0
          %v665 = vadd.f32 0.0, %v664
          %v666 = vpop.f32.mrb[0].mxu0
          %v667 = vpop.f32.mrb[0].mxu0
          %v668 = vadd.f32 0.0, %v667
          %v669 = vpop.f32.mrb[0].mxu0
          %670 = vmatprep.mubr.bf16.mxu0 0
          %671 = vmatmul.mubr.bf16.gmra.mrb[0].mxu0 %v517
          %v672 = vpop.f32.mrb[0].mxu0
          %v673 = vadd.f32 0.0, %v672
          %v674 = vpop.f32.mrb[0].mxu0
          %v675 = vpop.f32.mrb[0].mxu0
          %v676 = vadd.f32 0.0, %v675
          %v677 = vpop.f32.mrb[0].mxu0
          %678 = vdwg.mxu0
          %v679 = vpack.c.bf16 %v620, %v617
          %v680 = vpack.c.bf16 %v628, %v625
          %v681 = vpack.c.bf16 %v636, %v633
          %v682 = vpack.c.bf16 %v644, %v641
          %v683 = vpack.c.bf16 %v652, %v649
          %v684 = vpack.c.bf16 %v660, %v657
          %v685 = vpack.c.bf16 %v668, %v665
          %v686 = vpack.c.bf16 %v676, %v673
          %s687 = sshra.s32 %s273, 4
          %s688 = sand.u32 %s273, 15
          %s689 = smul.addr %s687, 8
          %s690 = scalar_lea.vmem [#allocation2], %s689
          %691 = vst [vmem:[%s690] sm:$0xff] %v679
          %692 = vst [vmem:[%s690 + $0x8] sm:$0xff] %v680
          %693 = vst [vmem:[%s690 + $0x10] sm:$0xff] %v681
          %694 = vst [vmem:[%s690 + $0x18] sm:$0xff] %v682
          %695 = vst [vmem:[%s690 + $0x20] sm:$0xff] %v683
          %696 = vst [vmem:[%s690 + $0x28] sm:$0xff] %v684
          %697 = vst [vmem:[%s690 + $0x30] sm:$0xff] %v685
          %698 = vst [vmem:[%s690 + $0x38] sm:$0xff] %v686
          %699 = vst [vmem:[#allocation10] sm:$0xff] %v448
          %700 = vst [vmem:[#allocation10 + $0x8] sm:$0xff] %v451
          %701 = vst [vmem:[#allocation10 + $0x10] sm:$0xff] %v456
          %702 = vst [vmem:[#allocation10 + $0x18] sm:$0xff] %v459
          %703 = vst [vmem:[#allocation10 + $0x20] sm:$0xff] %v464
          %704 = vst [vmem:[#allocation10 + $0x28] sm:$0xff] %v467
          %705 = vst [vmem:[#allocation10 + $0x30] sm:$0xff] %v472
          %706 = vst [vmem:[#allocation10 + $0x38] sm:$0xff] %v475
          %707 = vst [vmem:[#allocation10 + $0x40] sm:$0xff] %v480
          %708 = vst [vmem:[#allocation10 + $0x48] sm:$0xff] %v483
          %709 = vst [vmem:[#allocation10 + $0x50] sm:$0xff] %v488
          %710 = vst [vmem:[#allocation10 + $0x58] sm:$0xff] %v491
          %711 = vst [vmem:[#allocation10 + $0x60] sm:$0xff] %v496
          %712 = vst [vmem:[#allocation10 + $0x68] sm:$0xff] %v499
          %713 = vst [vmem:[#allocation10 + $0x70] sm:$0xff] %v504
          %714 = vst [vmem:[#allocation10 + $0x78] sm:$0xff] %v507
        $region52: #{tpu_custom_call.1} parent=35 // pred_fallthru
          _
        %p715 = scmp.eq.s32.totalorder %s22, 1
        // Predicated region
        $region53: #{tpu_custom_call.1} parent=35 // pred_check
          %p716 = pneg %p715
        $region54: #{tpu_custom_call.1} parent=35 // pred_check_branch
          %718 = sbr.rel (%p716) target = $region56
        $region55: #{tpu_custom_call.1} parent=35 // pred_region
          %v719 = vld [vmem:[#allocation4] sm:$0xf]
          %v720 = vld [vmem:[#allocation4 + $0x4] sm:$0xf]
          %v721 = vld [vmem:[#allocation4 + $0x8] sm:$0xf]
          %v722 = vld [vmem:[#allocation4 + $0xc] sm:$0xf]
          %v723 = vld [vmem:[#allocation4 + $0x10] sm:$0xf]
          %v724 = vld [vmem:[#allocation4 + $0x14] sm:$0xf]
          %v725 = vld [vmem:[#allocation4 + $0x18] sm:$0xf]
          %v726 = vld [vmem:[#allocation4 + $0x1c] sm:$0xf]
          %v727 = vld [vmem:[#allocation4 + $0x20] sm:$0xf]
          %v728 = vld [vmem:[#allocation4 + $0x24] sm:$0xf]
          %v729 = vld [vmem:[#allocation4 + $0x28] sm:$0xf]
          %v730 = vld [vmem:[#allocation4 + $0x2c] sm:$0xf]
          %v731 = vld [vmem:[#allocation4 + $0x30] sm:$0xf]
          %v732 = vld [vmem:[#allocation4 + $0x34] sm:$0xf]
          %v733 = vld [vmem:[#allocation4 + $0x38] sm:$0xf]
          %v734 = vld [vmem:[#allocation4 + $0x3c] sm:$0xf]
          %v735 = vld [vmem:[#allocation2] sm:$0xff]
          %v736 = vld [vmem:[#allocation2 + $0x8] sm:$0xff]
          %v737 = vld [vmem:[#allocation2 + $0x10] sm:$0xff]
          %v738 = vld [vmem:[#allocation2 + $0x18] sm:$0xff]
          %v739 = vld [vmem:[#allocation2 + $0x20] sm:$0xff]
          %v740 = vld [vmem:[#allocation2 + $0x28] sm:$0xff]
          %v741 = vld [vmem:[#allocation2 + $0x30] sm:$0xff]
          %v742 = vld [vmem:[#allocation2 + $0x38] sm:$0xff]
          %v743 = vld [vmem:[%s270] sm:$0x1]
          %v745 = vlaneseq
          %v746 = vshrl.u32 %v745, 7
          %v747 = vsub.s32 0, %v746
          %v748 = vrot.slane %v743, %v747
          %v766 = vunpack.c.l.b16 %v719
          %v767 = vunpack.c.l.b16 %v720
          %v768 = vunpack.c.l.b16 %v721
          %v769 = vunpack.c.l.b16 %v722
          %v770 = vunpack.c.l.b16 %v723
          %v771 = vunpack.c.l.b16 %v724
          %v772 = vunpack.c.l.b16 %v725
          %v773 = vunpack.c.l.b16 %v726
          %v774 = vunpack.c.l.b16 %v727
          %v775 = vunpack.c.l.b16 %v728
          %v776 = vunpack.c.l.b16 %v729
          %v777 = vunpack.c.l.b16 %v730
          %v778 = vunpack.c.l.b16 %v731
          %v779 = vunpack.c.l.b16 %v732
          %v780 = vunpack.c.l.b16 %v733
          %v781 = vunpack.c.l.b16 %v734
          %v782 = vpack.c.b16 %v767, %v766
          %v783 = vpack.c.b16 %v769, %v768
          %v784 = vpack.c.b16 %v771, %v770
          %v785 = vpack.c.b16 %v773, %v772
          %v786 = vpack.c.b16 %v775, %v774
          %v787 = vpack.c.b16 %v777, %v776
          %v788 = vpack.c.b16 %v779, %v778
          %v789 = vpack.c.b16 %v781, %v780
          %798 = vmatprep.subr.bf16.mxu0 0
          %799 = vmatpush1.bf16.msra.mxu0 %v735
          %800 = vmatprep.subr.bf16.mxu0 0
          %801 = vmatpush1.bf16.msra.mxu0 %v736
          %802 = vmatprep.subr.bf16.mxu0 0
          %803 = vmatpush1.bf16.msra.mxu0 %v737
          %804 = vmatprep.subr.bf16.mxu0 0
          %805 = vmatpush1.bf16.msra.mxu0 %v738
          %806 = vmatprep.subr.bf16.mxu0 0
          %807 = vmatpush1.bf16.msra.mxu0 %v739
          %808 = vmatprep.subr.bf16.mxu0 0
          %809 = vmatpush1.bf16.msra.mxu0 %v740
          %810 = vmatprep.subr.bf16.mxu0 0
          %811 = vmatpush1.bf16.msra.mxu0 %v741
          %812 = vmatprep.subr.bf16.mxu0 0
          %813 = vmatpush1.bf16.msra.mxu0 %v742
          %814 = vmatprep.subr.bf16.mxu0 0
          %815 = vmatpush1.bf16.msra.mxu0 0
          %816 = vmatprep.subr.bf16.mxu0 0
          %817 = vmatpush1.bf16.msra.mxu0 0
          %818 = vmatprep.subr.bf16.mxu0 0
          %819 = vmatpush1.bf16.msra.mxu0 0
          %820 = vmatprep.subr.bf16.mxu0 0
          %821 = vmatpush1.bf16.msra.mxu0 0
          %822 = vmatprep.subr.bf16.mxu0 0
          %823 = vmatpush1.bf16.msra.mxu0 0
          %824 = vmatprep.subr.bf16.mxu0 0
          %825 = vmatpush1.bf16.msra.mxu0 0
          %826 = vmatprep.subr.bf16.mxu0 0
          %827 = vmatpush1.bf16.msra.mxu0 0
          %828 = vmatprep.subr.bf16.mxu0 0
          %829 = vmatpush1.bf16.msra.mxu0 0
          %830 = vmatprep.mubr.bf16.mxu0 0
          %831 = vmatmul.mubr.bf16.gmra.mrb[0].mxu0 %v782
          %v832 = vpop.f32.mrb[0].mxu0
          %v833 = vadd.f32 %v748, %v832
          %v834 = vpop.f32.mrb[0].mxu0
          %v835 = vpop.f32.mrb[0].mxu0
          %v836 = vadd.f32 %v748, %v835
          %v837 = vpop.f32.mrb[0].mxu0
          %838 = vmatprep.mubr.bf16.mxu0 0
          %839 = vmatmul.mubr.bf16.gmra.mrb[0].mxu0 %v783
          %v840 = vpop.f32.mrb[0].mxu0
          %v841 = vadd.f32 %v748, %v840
          %v842 = vpop.f32.mrb[0].mxu0
          %v843 = vpop.f32.mrb[0].mxu0
          %v844 = vadd.f32 %v748, %v843
          %v845 = vpop.f32.mrb[0].mxu0
          %846 = vmatprep.mubr.bf16.mxu0 0
          %847 = vmatmul.mubr.bf16.gmra.mrb[0].mxu0 %v784
          %v848 = vpop.f32.mrb[0].mxu0
          %v849 = vadd.f32 %v748, %v848
          %v850 = vpop.f32.mrb[0].mxu0
          %v851 = vpop.f32.mrb[0].mxu0
          %v852 = vadd.f32 %v748, %v851
          %v853 = vpop.f32.mrb[0].mxu0
          %854 = vmatprep.mubr.bf16.mxu0 0
          %855 = vmatmul.mubr.bf16.gmra.mrb[0].mxu0 %v785
          %v856 = vpop.f32.mrb[0].mxu0
          %v857 = vadd.f32 %v748, %v856
          %v858 = vpop.f32.mrb[0].mxu0
          %v859 = vpop.f32.mrb[0].mxu0
          %v860 = vadd.f32 %v748, %v859
          %v861 = vpop.f32.mrb[0].mxu0
          %862 = vmatprep.mubr.bf16.mxu0 0
          %863 = vmatmul.mubr.bf16.gmra.mrb[0].mxu0 %v786
          %v864 = vpop.f32.mrb[0].mxu0
          %v865 = vadd.f32 %v748, %v864
          %v866 = vpop.f32.mrb[0].mxu0
          %v867 = vpop.f32.mrb[0].mxu0
          %v868 = vadd.f32 %v748, %v867
          %v869 = vpop.f32.mrb[0].mxu0
          %870 = vmatprep.mubr.bf16.mxu0 0
          %871 = vmatmul.mubr.bf16.gmra.mrb[0].mxu0 %v787
          %v872 = vpop.f32.mrb[0].mxu0
          %v873 = vadd.f32 %v748, %v872
          %v874 = vpop.f32.mrb[0].mxu0
          %v875 = vpop.f32.mrb[0].mxu0
          %v876 = vadd.f32 %v748, %v875
          %v877 = vpop.f32.mrb[0].mxu0
          %878 = vmatprep.mubr.bf16.mxu0 0
          %879 = vmatmul.mubr.bf16.gmra.mrb[0].mxu0 %v788
          %v880 = vpop.f32.mrb[0].mxu0
          %v881 = vadd.f32 %v748, %v880
          %v882 = vpop.f32.mrb[0].mxu0
          %v883 = vpop.f32.mrb[0].mxu0
          %v884 = vadd.f32 %v748, %v883
          %v885 = vpop.f32.mrb[0].mxu0
          %886 = vmatprep.mubr.bf16.mxu0 0
          %887 = vmatmul.mubr.bf16.gmra.mrb[0].mxu0 %v789
          %v888 = vpop.f32.mrb[0].mxu0
          %v889 = vadd.f32 %v748, %v888
          %v890 = vpop.f32.mrb[0].mxu0
          %v891 = vpop.f32.mrb[0].mxu0
          %v892 = vadd.f32 %v748, %v891
          %v893 = vpop.f32.mrb[0].mxu0
          %894 = vdwg.mxu0
          %v895 = vpack.c.bf16 %v836, %v833
          %v896 = vpack.c.bf16 %v844, %v841
          %v897 = vpack.c.bf16 %v852, %v849
          %v898 = vpack.c.bf16 %v860, %v857
          %v899 = vpack.c.bf16 %v868, %v865
          %v900 = vpack.c.bf16 %v876, %v873
          %v901 = vpack.c.bf16 %v884, %v881
          %v902 = vpack.c.bf16 %v892, %v889
          %v903 = vld [vmem:[%s244] sm:$0xf]
          %v904 = vld [vmem:[%s244 + $0x4] sm:$0xf]
          %v905 = vld [vmem:[%s244 + $0x8] sm:$0xf]
          %v906 = vld [vmem:[%s244 + $0xc] sm:$0xf]
          %v907 = vld [vmem:[%s244 + $0x10] sm:$0xf]
          %v908 = vld [vmem:[%s244 + $0x14] sm:$0xf]
          %v909 = vld [vmem:[%s244 + $0x18] sm:$0xf]
          %v910 = vld [vmem:[%s244 + $0x1c] sm:$0xf]
          %v911 = vld [vmem:[%s244 + $0x20] sm:$0xf]
          %v912 = vld [vmem:[%s244 + $0x24] sm:$0xf]
          %v913 = vld [vmem:[%s244 + $0x28] sm:$0xf]
          %v914 = vld [vmem:[%s244 + $0x2c] sm:$0xf]
          %v915 = vld [vmem:[%s244 + $0x30] sm:$0xf]
          %v916 = vld [vmem:[%s244 + $0x34] sm:$0xf]
          %v917 = vld [vmem:[%s244 + $0x38] sm:$0xf]
          %v918 = vld [vmem:[%s244 + $0x3c] sm:$0xf]
          %v935 = vunpack.c.l.b16 %v903
          %v936 = vunpack.c.l.b16 %v904
          %v937 = vunpack.c.l.b16 %v905
          %v938 = vunpack.c.l.b16 %v906
          %v939 = vunpack.c.l.b16 %v907
          %v940 = vunpack.c.l.b16 %v908
          %v941 = vunpack.c.l.b16 %v909
          %v942 = vunpack.c.l.b16 %v910
          %v943 = vunpack.c.l.b16 %v911
          %v944 = vunpack.c.l.b16 %v912
          %v945 = vunpack.c.l.b16 %v913
          %v946 = vunpack.c.l.b16 %v914
          %v947 = vunpack.c.l.b16 %v915
          %v948 = vunpack.c.l.b16 %v916
          %v949 = vunpack.c.l.b16 %v917
          %v950 = vunpack.c.l.b16 %v918
          %v951 = vpack.c.b16 %v936, %v935
          %v952 = vpack.c.b16 %v938, %v937
          %v953 = vpack.c.b16 %v940, %v939
          %v954 = vpack.c.b16 %v942, %v941
          %v955 = vpack.c.b16 %v944, %v943
          %v956 = vpack.c.b16 %v946, %v945
          %v957 = vpack.c.b16 %v948, %v947
          %v958 = vpack.c.b16 %v950, %v949
          %967 = vmatprep.subr.bf16.mxu0 0
          %968 = vmatpush1.bf16.msra.mxu0 %v951
          %969 = vmatprep.subr.bf16.mxu0 0
          %970 = vmatpush1.bf16.msra.mxu0 %v952
          %971 = vmatprep.subr.bf16.mxu0 0
          %972 = vmatpush1.bf16.msra.mxu0 %v953
          %973 = vmatprep.subr.bf16.mxu0 0
          %974 = vmatpush1.bf16.msra.mxu0 %v954
          %975 = vmatprep.subr.bf16.mxu0 0
          %976 = vmatpush1.bf16.msra.mxu0 %v955
          %977 = vmatprep.subr.bf16.mxu0 0
          %978 = vmatpush1.bf16.msra.mxu0 %v956
          %979 = vmatprep.subr.bf16.mxu0 0
          %980 = vmatpush1.bf16.msra.mxu0 %v957
          %981 = vmatprep.subr.bf16.mxu0 0
          %982 = vmatpush1.bf16.msra.mxu0 %v958
          %983 = vmatprep.subr.bf16.mxu0 0
          %984 = vmatpush1.bf16.msra.mxu0 0
          %985 = vmatprep.subr.bf16.mxu0 0
          %986 = vmatpush1.bf16.msra.mxu0 0
          %987 = vmatprep.subr.bf16.mxu0 0
          %988 = vmatpush1.bf16.msra.mxu0 0
          %989 = vmatprep.subr.bf16.mxu0 0
          %990 = vmatpush1.bf16.msra.mxu0 0
          %991 = vmatprep.subr.bf16.mxu0 0
          %992 = vmatpush1.bf16.msra.mxu0 0
          %993 = vmatprep.subr.bf16.mxu0 0
          %994 = vmatpush1.bf16.msra.mxu0 0
          %995 = vmatprep.subr.bf16.mxu0 0
          %996 = vmatpush1.bf16.msra.mxu0 0
          %997 = vmatprep.subr.bf16.mxu0 0
          %998 = vmatpush1.bf16.msra.mxu0 0
          %999 = vmatprep.mubr.bf16.mxu0 0
          %1000 = vmatmul.mubr.bf16.gmra.mrb[0].mxu0 %v895
          %v1001 = vpop.f32.mrb[0].mxu0
          %v1002 = vadd.f32 0.0, %v1001
          %v1003 = vpop.f32.mrb[0].mxu0
          %v1004 = vpop.f32.mrb[0].mxu0
          %v1005 = vadd.f32 0.0, %v1004
          %v1006 = vpop.f32.mrb[0].mxu0
          %1007 = vmatprep.mubr.bf16.mxu0 0
          %1008 = vmatmul.mubr.bf16.gmra.mrb[0].mxu0 %v896
          %v1009 = vpop.f32.mrb[0].mxu0
          %v1010 = vadd.f32 0.0, %v1009
          %v1011 = vpop.f32.mrb[0].mxu0
          %v1012 = vpop.f32.mrb[0].mxu0
          %v1013 = vadd.f32 0.0, %v1012
          %v1014 = vpop.f32.mrb[0].mxu0
          %1015 = vmatprep.mubr.bf16.mxu0 0
          %1016 = vmatmul.mubr.bf16.gmra.mrb[0].mxu0 %v897
          %v1017 = vpop.f32.mrb[0].mxu0
          %v1018 = vadd.f32 0.0, %v1017
          %v1019 = vpop.f32.mrb[0].mxu0
          %v1020 = vpop.f32.mrb[0].mxu0
          %v1021 = vadd.f32 0.0, %v1020
          %v1022 = vpop.f32.mrb[0].mxu0
          %1023 = vmatprep.mubr.bf16.mxu0 0
          %1024 = vmatmul.mubr.bf16.gmra.mrb[0].mxu0 %v898
          %v1025 = vpop.f32.mrb[0].mxu0
          %v1026 = vadd.f32 0.0, %v1025
          %v1027 = vpop.f32.mrb[0].mxu0
          %v1028 = vpop.f32.mrb[0].mxu0
          %v1029 = vadd.f32 0.0, %v1028
          %v1030 = vpop.f32.mrb[0].mxu0
          %1031 = vmatprep.mubr.bf16.mxu0 0
          %1032 = vmatmul.mubr.bf16.gmra.mrb[0].mxu0 %v899
          %v1033 = vpop.f32.mrb[0].mxu0
          %v1034 = vadd.f32 0.0, %v1033
          %v1035 = vpop.f32.mrb[0].mxu0
          %v1036 = vpop.f32.mrb[0].mxu0
          %v1037 = vadd.f32 0.0, %v1036
          %v1038 = vpop.f32.mrb[0].mxu0
          %1039 = vmatprep.mubr.bf16.mxu0 0
          %1040 = vmatmul.mubr.bf16.gmra.mrb[0].mxu0 %v900
          %v1041 = vpop.f32.mrb[0].mxu0
          %v1042 = vadd.f32 0.0, %v1041
          %v1043 = vpop.f32.mrb[0].mxu0
          %v1044 = vpop.f32.mrb[0].mxu0
          %v1045 = vadd.f32 0.0, %v1044
          %v1046 = vpop.f32.mrb[0].mxu0
          %1047 = vmatprep.mubr.bf16.mxu0 0
          %1048 = vmatmul.mubr.bf16.gmra.mrb[0].mxu0 %v901
          %v1049 = vpop.f32.mrb[0].mxu0
          %v1050 = vadd.f32 0.0, %v1049
          %v1051 = vpop.f32.mrb[0].mxu0
          %v1052 = vpop.f32.mrb[0].mxu0
          %v1053 = vadd.f32 0.0, %v1052
          %v1054 = vpop.f32.mrb[0].mxu0
          %1055 = vmatprep.mubr.bf16.mxu0 0
          %1056 = vmatmul.mubr.bf16.gmra.mrb[0].mxu0 %v902
          %v1057 = vpop.f32.mrb[0].mxu0
          %v1058 = vadd.f32 0.0, %v1057
          %v1059 = vpop.f32.mrb[0].mxu0
          %v1060 = vpop.f32.mrb[0].mxu0
          %v1061 = vadd.f32 0.0, %v1060
          %v1062 = vpop.f32.mrb[0].mxu0
          %1063 = vdwg.mxu0
          %v1064 = vpack.c.bf16 %v1005, %v1002
          %v1065 = vpack.c.bf16 %v1013, %v1010
          %v1066 = vpack.c.bf16 %v1021, %v1018
          %v1067 = vpack.c.bf16 %v1029, %v1026
          %v1068 = vpack.c.bf16 %v1037, %v1034
          %v1069 = vpack.c.bf16 %v1045, %v1042
          %v1070 = vpack.c.bf16 %v1053, %v1050
          %v1071 = vpack.c.bf16 %v1061, %v1058
          %s1072 = sshra.s32 %s273, 4
          %s1073 = sand.u32 %s273, 15
          %s1074 = smul.addr %s1072, 8
          %s1075 = scalar_lea.vmem [#allocation3], %s1074
          %1076 = vst [vmem:[%s1075] sm:$0xff] %v1064
          %1077 = vst [vmem:[%s1075 + $0x8] sm:$0xff] %v1065
          %1078 = vst [vmem:[%s1075 + $0x10] sm:$0xff] %v1066
          %1079 = vst [vmem:[%s1075 + $0x18] sm:$0xff] %v1067
          %1080 = vst [vmem:[%s1075 + $0x20] sm:$0xff] %v1068
          %1081 = vst [vmem:[%s1075 + $0x28] sm:$0xff] %v1069
          %1082 = vst [vmem:[%s1075 + $0x30] sm:$0xff] %v1070
          %1083 = vst [vmem:[%s1075 + $0x38] sm:$0xff] %v1071
          %1084 = vst [vmem:[#allocation10] sm:$0xff] %v833
          %1085 = vst [vmem:[#allocation10 + $0x8] sm:$0xff] %v836
          %1086 = vst [vmem:[#allocation10 + $0x10] sm:$0xff] %v841
          %1087 = vst [vmem:[#allocation10 + $0x18] sm:$0xff] %v844
          %1088 = vst [vmem:[#allocation10 + $0x20] sm:$0xff] %v849
          %1089 = vst [vmem:[#allocation10 + $0x28] sm:$0xff] %v852
          %1090 = vst [vmem:[#allocation10 + $0x30] sm:$0xff] %v857
          %1091 = vst [vmem:[#allocation10 + $0x38] sm:$0xff] %v860
          %1092 = vst [vmem:[#allocation10 + $0x40] sm:$0xff] %v865
          %1093 = vst [vmem:[#allocation10 + $0x48] sm:$0xff] %v868
          %1094 = vst [vmem:[#allocation10 + $0x50] sm:$0xff] %v873
          %1095 = vst [vmem:[#allocation10 + $0x58] sm:$0xff] %v876
          %1096 = vst [vmem:[#allocation10 + $0x60] sm:$0xff] %v881
          %1097 = vst [vmem:[#allocation10 + $0x68] sm:$0xff] %v884
          %1098 = vst [vmem:[#allocation10 + $0x70] sm:$0xff] %v889
          %1099 = vst [vmem:[#allocation10 + $0x78] sm:$0xff] %v892
        $region56: #{tpu_custom_call.1} parent=35 // pred_fallthru
          _
        %p1100 = scmp.eq.s32.totalorder %s22, 2
        // Predicated region
        $region57: #{tpu_custom_call.1} parent=35 // pred_check
          %p1101 = pneg %p1100
        $region58: #{tpu_custom_call.1} parent=35 // pred_check_branch
          %1103 = sbr.rel (%p1101) target = $region60
        $region59: #{tpu_custom_call.1} parent=35 // pred_region
          %v1104 = vld [vmem:[#allocation4] sm:$0xf]
          %v1105 = vld [vmem:[#allocation4 + $0x4] sm:$0xf]
          %v1106 = vld [vmem:[#allocation4 + $0x8] sm:$0xf]
          %v1107 = vld [vmem:[#allocation4 + $0xc] sm:$0xf]
          %v1108 = vld [vmem:[#allocation4 + $0x10] sm:$0xf]
          %v1109 = vld [vmem:[#allocation4 + $0x14] sm:$0xf]
          %v1110 = vld [vmem:[#allocation4 + $0x18] sm:$0xf]
          %v1111 = vld [vmem:[#allocation4 + $0x1c] sm:$0xf]
          %v1112 = vld [vmem:[#allocation4 + $0x20] sm:$0xf]
          %v1113 = vld [vmem:[#allocation4 + $0x24] sm:$0xf]
          %v1114 = vld [vmem:[#allocation4 + $0x28] sm:$0xf]
          %v1115 = vld [vmem:[#allocation4 + $0x2c] sm:$0xf]
          %v1116 = vld [vmem:[#allocation4 + $0x30] sm:$0xf]
          %v1117 = vld [vmem:[#allocation4 + $0x34] sm:$0xf]
          %v1118 = vld [vmem:[#allocation4 + $0x38] sm:$0xf]
          %v1119 = vld [vmem:[#allocation4 + $0x3c] sm:$0xf]
          %v1120 = vld [vmem:[#allocation3] sm:$0xff]
          %v1121 = vld [vmem:[#allocation3 + $0x8] sm:$0xff]
          %v1122 = vld [vmem:[#allocation3 + $0x10] sm:$0xff]
          %v1123 = vld [vmem:[#allocation3 + $0x18] sm:$0xff]
          %v1124 = vld [vmem:[#allocation3 + $0x20] sm:$0xff]
          %v1125 = vld [vmem:[#allocation3 + $0x28] sm:$0xff]
          %v1126 = vld [vmem:[#allocation3 + $0x30] sm:$0xff]
          %v1127 = vld [vmem:[#allocation3 + $0x38] sm:$0xff]
          %v1128 = vld [vmem:[%s270] sm:$0x1]
          %v1130 = vlaneseq
          %v1131 = vshrl.u32 %v1130, 7
          %v1132 = vsub.s32 0, %v1131
          %v1133 = vrot.slane %v1128, %v1132
          %v1151 = vunpack.c.l.b16 %v1104
          %v1152 = vunpack.c.l.b16 %v1105
          %v1153 = vunpack.c.l.b16 %v1106
          %v1154 = vunpack.c.l.b16 %v1107
          %v1155 = vunpack.c.l.b16 %v1108
          %v1156 = vunpack.c.l.b16 %v1109
          %v1157 = vunpack.c.l.b16 %v1110
          %v1158 = vunpack.c.l.b16 %v1111
          %v1159 = vunpack.c.l.b16 %v1112
          %v1160 = vunpack.c.l.b16 %v1113
          %v1161 = vunpack.c.l.b16 %v1114
          %v1162 = vunpack.c.l.b16 %v1115
          %v1163 = vunpack.c.l.b16 %v1116
          %v1164 = vunpack.c.l.b16 %v1117
          %v1165 = vunpack.c.l.b16 %v1118
          %v1166 = vunpack.c.l.b16 %v1119
          %v1167 = vpack.c.b16 %v1152, %v1151
          %v1168 = vpack.c.b16 %v1154, %v1153
          %v1169 = vpack.c.b16 %v1156, %v1155
          %v1170 = vpack.c.b16 %v1158, %v1157
          %v1171 = vpack.c.b16 %v1160, %v1159
          %v1172 = vpack.c.b16 %v1162, %v1161
          %v1173 = vpack.c.b16 %v1164, %v1163
          %v1174 = vpack.c.b16 %v1166, %v1165
          %1183 = vmatprep.subr.bf16.mxu0 0
          %1184 = vmatpush1.bf16.msra.mxu0 %v1120
          %1185 = vmatprep.subr.bf16.mxu0 0
          %1186 = vmatpush1.bf16.msra.mxu0 %v1121
          %1187 = vmatprep.subr.bf16.mxu0 0
          %1188 = vmatpush1.bf16.msra.mxu0 %v1122
          %1189 = vmatprep.subr.bf16.mxu0 0
          %1190 = vmatpush1.bf16.msra.mxu0 %v1123
          %1191 = vmatprep.subr.bf16.mxu0 0
          %1192 = vmatpush1.bf16.msra.mxu0 %v1124
          %1193 = vmatprep.subr.bf16.mxu0 0
          %1194 = vmatpush1.bf16.msra.mxu0 %v1125
          %1195 = vmatprep.subr.bf16.mxu0 0
          %1196 = vmatpush1.bf16.msra.mxu0 %v1126
          %1197 = vmatprep.subr.bf16.mxu0 0
          %1198 = vmatpush1.bf16.msra.mxu0 %v1127
          %1199 = vmatprep.subr.bf16.mxu0 0
          %1200 = vmatpush1.bf16.msra.mxu0 0
          %1201 = vmatprep.subr.bf16.mxu0 0
          %1202 = vmatpush1.bf16.msra.mxu0 0
          %1203 = vmatprep.subr.bf16.mxu0 0
          %1204 = vmatpush1.bf16.msra.mxu0 0
          %1205 = vmatprep.subr.bf16.mxu0 0
          %1206 = vmatpush1.bf16.msra.mxu0 0
          %1207 = vmatprep.subr.bf16.mxu0 0
          %1208 = vmatpush1.bf16.msra.mxu0 0
          %1209 = vmatprep.subr.bf16.mxu0 0
          %1210 = vmatpush1.bf16.msra.mxu0 0
          %1211 = vmatprep.subr.bf16.mxu0 0
          %1212 = vmatpush1.bf16.msra.mxu0 0
          %1213 = vmatprep.subr.bf16.mxu0 0
          %1214 = vmatpush1.bf16.msra.mxu0 0
          %1215 = vmatprep.mubr.bf16.mxu0 0
          %1216 = vmatmul.mubr.bf16.gmra.mrb[0].mxu0 %v1167
          %v1217 = vpop.f32.mrb[0].mxu0
          %v1218 = vadd.f32 %v1133, %v1217
          %v1219 = vpop.f32.mrb[0].mxu0
          %v1220 = vpop.f32.mrb[0].mxu0
          %v1221 = vadd.f32 %v1133, %v1220
          %v1222 = vpop.f32.mrb[0].mxu0
          %1223 = vmatprep.mubr.bf16.mxu0 0
          %1224 = vmatmul.mubr.bf16.gmra.mrb[0].mxu0 %v1168
          %v1225 = vpop.f32.mrb[0].mxu0
          %v1226 = vadd.f32 %v1133, %v1225
          %v1227 = vpop.f32.mrb[0].mxu0
          %v1228 = vpop.f32.mrb[0].mxu0
          %v1229 = vadd.f32 %v1133, %v1228
          %v1230 = vpop.f32.mrb[0].mxu0
          %1231 = vmatprep.mubr.bf16.mxu0 0
          %1232 = vmatmul.mubr.bf16.gmra.mrb[0].mxu0 %v1169
          %v1233 = vpop.f32.mrb[0].mxu0
          %v1234 = vadd.f32 %v1133, %v1233
          %v1235 = vpop.f32.mrb[0].mxu0
          %v1236 = vpop.f32.mrb[0].mxu0
          %v1237 = vadd.f32 %v1133, %v1236
          %v1238 = vpop.f32.mrb[0].mxu0
          %1239 = vmatprep.mubr.bf16.mxu0 0
          %1240 = vmatmul.mubr.bf16.gmra.mrb[0].mxu0 %v1170
          %v1241 = vpop.f32.mrb[0].mxu0
          %v1242 = vadd.f32 %v1133, %v1241
          %v1243 = vpop.f32.mrb[0].mxu0
          %v1244 = vpop.f32.mrb[0].mxu0
          %v1245 = vadd.f32 %v1133, %v1244
          %v1246 = vpop.f32.mrb[0].mxu0
          %1247 = vmatprep.mubr.bf16.mxu0 0
          %1248 = vmatmul.mubr.bf16.gmra.mrb[0].mxu0 %v1171
          %v1249 = vpop.f32.mrb[0].mxu0
          %v1250 = vadd.f32 %v1133, %v1249
          %v1251 = vpop.f32.mrb[0].mxu0
          %v1252 = vpop.f32.mrb[0].mxu0
          %v1253 = vadd.f32 %v1133, %v1252
          %v1254 = vpop.f32.mrb[0].mxu0
          %1255 = vmatprep.mubr.bf16.mxu0 0
          %1256 = vmatmul.mubr.bf16.gmra.mrb[0].mxu0 %v1172
          %v1257 = vpop.f32.mrb[0].mxu0
          %v1258 = vadd.f32 %v1133, %v1257
          %v1259 = vpop.f32.mrb[0].mxu0
          %v1260 = vpop.f32.mrb[0].mxu0
          %v1261 = vadd.f32 %v1133, %v1260
          %v1262 = vpop.f32.mrb[0].mxu0
          %1263 = vmatprep.mubr.bf16.mxu0 0
          %1264 = vmatmul.mubr.bf16.gmra.mrb[0].mxu0 %v1173
          %v1265 = vpop.f32.mrb[0].mxu0
          %v1266 = vadd.f32 %v1133, %v1265
          %v1267 = vpop.f32.mrb[0].mxu0
          %v1268 = vpop.f32.mrb[0].mxu0
          %v1269 = vadd.f32 %v1133, %v1268
          %v1270 = vpop.f32.mrb[0].mxu0
          %1271 = vmatprep.mubr.bf16.mxu0 0
          %1272 = vmatmul.mubr.bf16.gmra.mrb[0].mxu0 %v1174
          %v1273 = vpop.f32.mrb[0].mxu0
          %v1274 = vadd.f32 %v1133, %v1273
          %v1275 = vpop.f32.mrb[0].mxu0
          %v1276 = vpop.f32.mrb[0].mxu0
          %v1277 = vadd.f32 %v1133, %v1276
          %v1278 = vpop.f32.mrb[0].mxu0
          %1279 = vdwg.mxu0
          %1280 = vst [vmem:[#allocation10] sm:$0xff] %v1218
          %1281 = vst [vmem:[#allocation10 + $0x8] sm:$0xff] %v1221
          %1282 = vst [vmem:[#allocation10 + $0x10] sm:$0xff] %v1226
          %1283 = vst [vmem:[#allocation10 + $0x18] sm:$0xff] %v1229
          %1284 = vst [vmem:[#allocation10 + $0x20] sm:$0xff] %v1234
          %1285 = vst [vmem:[#allocation10 + $0x28] sm:$0xff] %v1237
          %1286 = vst [vmem:[#allocation10 + $0x30] sm:$0xff] %v1242
          %1287 = vst [vmem:[#allocation10 + $0x38] sm:$0xff] %v1245
          %1288 = vst [vmem:[#allocation10 + $0x40] sm:$0xff] %v1250
          %1289 = vst [vmem:[#allocation10 + $0x48] sm:$0xff] %v1253
          %1290 = vst [vmem:[#allocation10 + $0x50] sm:$0xff] %v1258
          %1291 = vst [vmem:[#allocation10 + $0x58] sm:$0xff] %v1261
          %1292 = vst [vmem:[#allocation10 + $0x60] sm:$0xff] %v1266
          %1293 = vst [vmem:[#allocation10 + $0x68] sm:$0xff] %v1269
          %1294 = vst [vmem:[#allocation10 + $0x70] sm:$0xff] %v1274
          %1295 = vst [vmem:[#allocation10 + $0x78] sm:$0xff] %v1277
        $region60: #{tpu_custom_call.1} parent=35 // pred_fallthru
          _
        // Predicated region
        $region61: #{tpu_custom_call.1} parent=35 // pred_check
          %p1296 = pneg %p147
        $region62: #{tpu_custom_call.1} parent=35 // pred_check_branch
          %1298 = sbr.rel (%p1296) target = $region64
        $region63: #{tpu_custom_call.1} parent=35 // pred_region
          %s1299 = smul.u32 16, %s23
          %s1301 = ssub.s32 2048, 2048
          %1302 = vsyncadd [#allocation6], %s1301
          %s1303 = smul.addr %s1299, 128
          %s1304 = scalar_lea.hbm %s4, %s1303
          %s1305 = sshll.u32 [#allocation10], 4
          %s1306 = int_to_ptr.vmem [resolvable:$true] %s1305
          %1311 = dma.vmem_to_hbm [thread:$0]  %s1306, 2048, %s1304, [#allocation6], 128, 128, 8
        $region64: #{tpu_custom_call.1} parent=35 // pred_fallthru
          _
        // Predicated region
        $region65: #{tpu_custom_call.1} parent=35 // pred_check
          %p1312 = pneg %p147
        $region66: #{tpu_custom_call.1} parent=35 // pred_check_branch
          %1314 = sbr.rel (%p1312) target = $region68
        $region67: #{tpu_custom_call.1} parent=35 // pred_region
          %1315 = dma.done [#allocation6], 2048
        $region68: #{tpu_custom_call.1} parent=35 // pred_fallthru
          _
      $region36: #{tpu_custom_call.1} parent=5 // pred_fallthru
        _
      %p1316 = scmp.le.s32.totalorder 2, %s13
      // Predicated region
      $region69: #{tpu_custom_call.1} parent=5 // pred_check
        %p1317 = pneg %p1316
      $region70: #{tpu_custom_call.1} parent=5 // pred_check_branch
        %1319 = sbr.rel (%p1317) target = $region72
      $region71: #{tpu_custom_call.1} parent=5 // pred_region
        %s1320 = ssub.s32 %s13, 2
      $region72: #{tpu_custom_call.1} parent=5 // pred_fallthru
        _
    $region6: #{tpu_custom_call.1} parent=1 // loop_footer
      %s17 = sadd.s32 1, %s13
    $region7: #{tpu_custom_call.1} parent=1 // loop_footer_branch
      %12 = sbr.rel target = $region3
    $region8: #{tpu_custom_call.1} parent=1 // loop_exit
      _
    %1321 = vsyncpa [#allocation5], 1
    %s1322 = scalar_lea.sflag [#allocation5], 1
    %1323 = vsyncpa %s1322, 1
    %1324 = vsyncpa [#allocation8], 1
    %1325 = vsyncpa [#allocation6], 1
    %s1326 = scalar_lea.sflag [#allocation6], 1
    %1327 = vsyncpa %s1326, 1

</llo_original>
